<compile_context>
chip_gen: v7x
topology: tpu7x:2x2x1
jax: 0.10.0
libtpu: 0.0.40
codegen_flags: <defaults>
</compile_context>

<pallas_src>
import functools

import jax
import jax.numpy as jnp
import numpy as np
from jax.experimental import pallas as pl
from jax.experimental.pallas import tpu as pltpu


# ------------------------------ Pallas kernel ------------------------------

def _primary_caps_kernel(p_ref, w_ref, b_ref, csel_ref, psel_ref, cselt_ref,
                         o_ref, *, n_caps, dim_caps):
    # p_ref:     (K, P)       im2col patches^T for this batch element
    # w_ref:     (C_out, K)   flattened conv weight
    # b_ref:     (C_out, 1)   conv bias
    # csel_ref:  (F, C_out)   0/1 channel selector, F = C_out*P, row r = d*n_caps+g
    # psel_ref:  (F, P)       0/1 pixel selector (same row ordering)
    # cselt_ref: (C_out, F)   csel transposed (precomputed -> no in-kernel transpose)
    # o_ref:     (C_out, P)   squashed conv output, already in NCHW-flat order

    # --- conv as an MXU matmul, directly in NCHW (channel-major, pixel-minor) ---
    conv = jnp.dot(w_ref[...], p_ref[...],
                   preferred_element_type=jnp.float32) + b_ref[...]       # (C_out, P)

    # --- gather capsule elements: row r = d*n_caps + g  ->  caps[g, d] ----------
    psel = psel_ref[...]                                                  # (F, P)
    rows = jnp.dot(csel_ref[...], conv,
                   preferred_element_type=jnp.float32)                    # (F, P): row r -> conv[c_r, :]
    caps_elem = jnp.sum(rows * psel, axis=-1, keepdims=True)              # (F, 1): row r -> caps[g, d]

    # --- capsule squared norms: sq[g] = sum_d caps[g, d]^2 ----------------------
    sq = jnp.zeros((n_caps, 1), dtype=jnp.float32)
    for d in range(dim_caps):                                             # static unroll
        e = caps_elem[d * n_caps:(d + 1) * n_caps, :]
        sq = sq + e * e

    # --- squash scale (torch: ||v||^2 / (1+||v||^2) / (||v||+1e-8)) -------------
    # This is an (n_caps, 1) sliver, so EUP-vs-VPU routing of sqrt/div is
    # immaterial; keep the exact reference formula for fidelity.
    norm = jnp.sqrt(sq)
    scale = sq / ((1.0 + sq) * (norm + 1e-8))                             # (n_caps, 1)

    # --- broadcast per-capsule scale back to the (C_out, P) conv layout ---------
    scale_all = jnp.concatenate([scale] * dim_caps, axis=0)               # (F, 1): row r -> scale[g]
    scale_cp = jnp.dot(cselt_ref[...], scale_all * psel,
                       preferred_element_type=jnp.float32)                # (C_out, P)

    o_ref[...] = (conv * scale_cp).astype(o_ref.dtype)


# ------------------------------- JAX wrapper --------------------------------

def _im2col_t(x, kh, kw, stride, padding):
    """x: (B, C, H, W) -> patches^T (B, C*kh*kw, OH*OW); K ordered (C, kh, kw)."""
    if padding > 0:
        x = jnp.pad(x, ((0, 0), (0, 0), (padding, padding), (padding, padding)))
    B, C, H, W = x.shape
    OH = (H - kh) // stride + 1
    OW = (W - kw) // stride + 1
    cols = []
    for i in range(kh):
        for j in range(kw):
            cols.append(x[:, :, i:i + stride * OH:stride, j:j + stride * OW:stride])
    patches = jnp.stack(cols, axis=2)                     # (B, C, kh*kw, OH, OW)
    patches = patches.reshape(B, C * kh * kw, OH * OW)    # (B, K, P)
    return patches, OH, OW


def _capsule_selectors(c_out, p, dim_caps):
    """Constant 0/1 selectors mapping NCHW-flat element f=(c*p_idx) to (capsule g, dim d)."""
    f = np.arange(c_out * p)
    n_caps = (c_out * p) // dim_caps
    g = f // dim_caps
    d = f % dim_caps
    r = d * n_caps + g                 # gathered-row index (d-major blocks of n_caps)
    c_of = f // p
    p_of = f % p
    csel = np.zeros((c_out * p, c_out), np.float32)
    psel = np.zeros((c_out * p, p), np.float32)
    csel[r, c_of] = 1.0
    psel[r, p_of] = 1.0
    return jnp.asarray(csel), jnp.asarray(psel), jnp.asarray(csel.T)


@functools.partial(jax.jit,
                   static_argnames=("dim_caps", "kernel_size", "stride", "padding"))
def primary_capsule_forward(x, weight, bias, *, dim_caps, kernel_size, stride, padding):
    """x: (B, C_in, H, W) NCHW, weight: (C_out, C_in, KH, KW), bias: (C_out,)."""
    B, C_in, H, W = x.shape
    C_out = weight.shape[0]
    KH = KW = kernel_size

    patches_t, OH, OW = _im2col_t(x, KH, KW, stride, padding)     # (B, K, P)
    K = C_in * KH * KW
    P = OH * OW
    F = C_out * P
    if F % dim_caps != 0:
        raise ValueError("dim_caps must divide C_out*OH*OW (same as the torch module)")
    n_caps = F // dim_caps

    w2d = weight.reshape(C_out, K)                                # (C_out, K)
    b2d = bias.reshape(C_out, 1)                                  # (C_out, 1)
    csel, psel, cselt = _capsule_selectors(C_out, P, dim_caps)

    flops = 2 * B * (C_out * K * P        # conv matmul
                     + F * C_out * P      # capsule gather matmul
                     + C_out * F * P)     # scale broadcast-back matmul
    bytes_accessed = 4 * (patches_t.size + w2d.size + b2d.size
                          + csel.size + psel.size + cselt.size + B * C_out * P)
    cost = pl.CostEstimate(flops=flops,
                           transcendentals=B * n_caps,
                           bytes_accessed=bytes_accessed)

    out_nchw = pl.pallas_call(
        functools.partial(_primary_caps_kernel, n_caps=n_caps, dim_caps=dim_caps),
        out_shape=jax.ShapeDtypeStruct((B, C_out, P), jnp.float32),
        grid=(B,),
        in_specs=[
            pl.BlockSpec((None, K, P), lambda b: (b, 0, 0)),      # patches^T (per batch)
            pl.BlockSpec((C_out, K), lambda b: (0, 0)),           # weight (resident)
            pl.BlockSpec((C_out, 1), lambda b: (0, 0)),           # bias (resident)
            pl.BlockSpec((F, C_out), lambda b: (0, 0)),           # channel selector
            pl.BlockSpec((F, P), lambda b: (0, 0)),               # pixel selector
            pl.BlockSpec((C_out, F), lambda b: (0, 0)),           # selector transpose
        ],
        out_specs=pl.BlockSpec((None, C_out, P), lambda b: (b, 0, 0)),
        compiler_params=pltpu.CompilerParams(
            dimension_semantics=("parallel",),
            vmem_limit_bytes=32 * 1024 * 1024,
        ),
        cost_estimate=cost,
    )(patches_t, w2d, b2d, csel, psel, cselt)

    # (B, C_out, P) is NCHW-flat, so this reshape is contiguous (free) and matches
    # torch's .view(B, -1, dim_caps).
    return out_nchw.reshape(B, n_caps, dim_caps)


# ---------------------------- reference (pure JAX) ---------------------------

def _reference(x, weight, bias, *, dim_caps, kernel_size, stride, padding):
    y = jax.lax.conv_general_dilated(
        x, weight, window_strides=(stride, stride),
        padding=[(padding, padding), (padding, padding)],
        dimension_numbers=("NCHW", "OIHW", "NCHW"),
    ) + bias.reshape(1, -1, 1, 1)
    B = x.shape[0]
    y = y.reshape(B, -1, dim_caps)
    sq = jnp.sum(y * y, axis=-1, keepdims=True)
    norm = jnp.sqrt(sq)
    scale = sq / (1.0 + sq) / (norm + 1e-8)
    return scale * y


# ----------------------------------- main ------------------------------------

if __name__ == "__main__":
    key = jax.random.PRNGKey(0)
    k_x, k_w, k_b = jax.random.split(key, 3)

    # Small shapes consistent with the module.
    B, C_in, H, W = 2, 4, 16, 16
    C_out, dim_caps = 16, 8
    kernel_size, stride, padding = 3, 2, 0

    x = jax.random.normal(k_x, (B, C_in, H, W), dtype=jnp.float32)
    weight = jax.random.normal(k_w, (C_out, C_in, kernel_size, kernel_size),
                               dtype=jnp.float32) * 0.1
    bias = jax.random.normal(k_b, (C_out,), dtype=jnp.float32) * 0.1

    out = primary_capsule_forward(
        x, weight, bias,
        dim_caps=dim_caps, kernel_size=kernel_size, stride=stride, padding=padding)
    out = jax.block_until_ready(out)

    ref = _reference(x, weight, bias, dim_caps=dim_caps,
                     kernel_size=kernel_size, stride=stride, padding=padding)
    assert out.shape == ref.shape, (out.shape, ref.shape)
    max_err = float(jnp.max(jnp.abs(out - ref)))
    assert jnp.allclose(out, ref, atol=2e-4, rtol=2e-4), max_err

    print("KERNEL_OK")
</pallas_src>

<mosaic_0001>
module attributes {stable_mosaic.version = 11 : i64} {
  func.func @_primary_caps_kernel(%arg0: i32, %arg1: memref<1x36x49xf32, #tpu.memory_space<vmem>>, %arg2: memref<16x36xf32, #tpu.memory_space<vmem>>, %arg3: memref<16x1xf32, #tpu.memory_space<vmem>>, %arg4: memref<784x16xf32, #tpu.memory_space<vmem>>, %arg5: memref<784x49xf32, #tpu.memory_space<vmem>>, %arg6: memref<16x784xf32, #tpu.memory_space<vmem>>, %arg7: memref<1x16x49xf32, #tpu.memory_space<vmem>>) attributes {dimension_semantics = [#tpu.dimension_semantics<parallel>], iteration_bounds = array<i64: 2>, scalar_prefetch = 0 : i64, scratch_operands = 0 : i64, tpu.core_type = #tpu.core_type<tc>, window_params = [{transform_indices = @transform_0, window_bounds = array<i64: 1, 36, 49>}, {pipeline_mode = #tpu.pipeline_mode<synchronous>, transform_indices = @transform_1, window_bounds = array<i64: 16, 36>}, {pipeline_mode = #tpu.pipeline_mode<synchronous>, transform_indices = @transform_2, window_bounds = array<i64: 16, 1>}, {pipeline_mode = #tpu.pipeline_mode<synchronous>, transform_indices = @transform_3, window_bounds = array<i64: 784, 16>}, {pipeline_mode = #tpu.pipeline_mode<synchronous>, transform_indices = @transform_4, window_bounds = array<i64: 784, 49>}, {pipeline_mode = #tpu.pipeline_mode<synchronous>, transform_indices = @transform_5, window_bounds = array<i64: 16, 784>}, {transform_indices = @transform_6, window_bounds = array<i64: 1, 16, 49>}]} {
    %c0 = arith.constant 0 : index
    %c0_0 = arith.constant 0 : index
    %0 = vector.load %arg2[%c0, %c0_0] : memref<16x36xf32, #tpu.memory_space<vmem>>, vector<16x36xf32>
    %c0_1 = arith.constant 0 : index
    %c0_2 = arith.constant 0 : index
    %c0_3 = arith.constant 0 : index
    %1 = vector.load %arg1[%c0_1, %c0_2, %c0_3] : memref<1x36x49xf32, #tpu.memory_space<vmem>>, vector<1x36x49xf32>
    %2 = vector.shape_cast %1 : vector<1x36x49xf32> to vector<36x49xf32>
    %cst = arith.constant dense<0.000000e+00> : vector<16x49xf32>
    %3 = tpu.matmul %0, %2, %cst {dimension_numbers = #tpu.dot_dimension_numbers<[1], [0], [0], [1], [0, 0, 1, 1], [], []>} : vector<16x36xf32>, vector<36x49xf32>, vector<16x49xf32> -> vector<16x49xf32>
    %c0_4 = arith.constant 0 : index
    %c0_5 = arith.constant 0 : index
    %4 = vector.load %arg3[%c0_4, %c0_5] : memref<16x1xf32, #tpu.memory_space<vmem>>, vector<16x1xf32>
    %5 = vector.broadcast %4 : vector<16x1xf32> to vector<16x49xf32>
    %6 = arith.addf %3, %5 : vector<16x49xf32>
    %c0_6 = arith.constant 0 : index
    %c0_7 = arith.constant 0 : index
    %7 = vector.load %arg5[%c0_6, %c0_7] : memref<784x49xf32, #tpu.memory_space<vmem>>, vector<784x49xf32>
    %c0_8 = arith.constant 0 : index
    %c0_9 = arith.constant 0 : index
    %8 = vector.load %arg4[%c0_8, %c0_9] : memref<784x16xf32, #tpu.memory_space<vmem>>, vector<784x16xf32>
    %cst_10 = arith.constant dense<0.000000e+00> : vector<784x49xf32>
    %9 = tpu.matmul %8, %6, %cst_10 {dimension_numbers = #tpu.dot_dimension_numbers<[1], [0], [0], [1], [0, 0, 1, 1], [], []>} : vector<784x16xf32>, vector<16x49xf32>, vector<784x49xf32> -> vector<784x49xf32>
    %10 = arith.mulf %9, %7 : vector<784x49xf32>
    %cst_11 = arith.constant dense<0.000000e+00> : vector<784xf32>
    %11 = vector.multi_reduction <add>, %10, %cst_11 [1] : vector<784x49xf32> to vector<784xf32>
    %12 = vector.shape_cast %11 : vector<784xf32> to vector<784x1xf32>
    %cst_12 = arith.constant 0.000000e+00 : f32
    %13 = vector.broadcast %cst_12 : f32 to vector<98x1xf32>
    %14 = vector.extract_strided_slice %12 {offsets = [0, 0], sizes = [98, 1], strides = [1, 1]} : vector<784x1xf32> to vector<98x1xf32>
    %15 = arith.mulf %14, %14 : vector<98x1xf32>
    %16 = arith.addf %13, %15 : vector<98x1xf32>
    %17 = vector.extract_strided_slice %12 {offsets = [98, 0], sizes = [98, 1], strides = [1, 1]} : vector<784x1xf32> to vector<98x1xf32>
    %18 = arith.mulf %17, %17 : vector<98x1xf32>
    %19 = arith.addf %16, %18 : vector<98x1xf32>
    %20 = vector.extract_strided_slice %12 {offsets = [196, 0], sizes = [98, 1], strides = [1, 1]} : vector<784x1xf32> to vector<98x1xf32>
    %21 = arith.mulf %20, %20 : vector<98x1xf32>
    %22 = arith.addf %19, %21 : vector<98x1xf32>
    %23 = vector.extract_strided_slice %12 {offsets = [294, 0], sizes = [98, 1], strides = [1, 1]} : vector<784x1xf32> to vector<98x1xf32>
    %24 = arith.mulf %23, %23 : vector<98x1xf32>
    %25 = arith.addf %22, %24 : vector<98x1xf32>
    %26 = vector.extract_strided_slice %12 {offsets = [392, 0], sizes = [98, 1], strides = [1, 1]} : vector<784x1xf32> to vector<98x1xf32>
    %27 = arith.mulf %26, %26 : vector<98x1xf32>
    %28 = arith.addf %25, %27 : vector<98x1xf32>
    %29 = vector.extract_strided_slice %12 {offsets = [490, 0], sizes = [98, 1], strides = [1, 1]} : vector<784x1xf32> to vector<98x1xf32>
    %30 = arith.mulf %29, %29 : vector<98x1xf32>
    %31 = arith.addf %28, %30 : vector<98x1xf32>
    %32 = vector.extract_strided_slice %12 {offsets = [588, 0], sizes = [98, 1], strides = [1, 1]} : vector<784x1xf32> to vector<98x1xf32>
    %33 = arith.mulf %32, %32 : vector<98x1xf32>
    %34 = arith.addf %31, %33 : vector<98x1xf32>
    %35 = vector.extract_strided_slice %12 {offsets = [686, 0], sizes = [98, 1], strides = [1, 1]} : vector<784x1xf32> to vector<98x1xf32>
    %36 = arith.mulf %35, %35 : vector<98x1xf32>
    %37 = arith.addf %34, %36 : vector<98x1xf32>
    %38 = math.sqrt %37 : vector<98x1xf32>
    %cst_13 = arith.constant 1.000000e+00 : f32
    %39 = vector.broadcast %cst_13 : f32 to vector<98x1xf32>
    %40 = arith.addf %39, %37 : vector<98x1xf32>
    %cst_14 = arith.constant 9.99999993E-9 : f32
    %41 = vector.broadcast %cst_14 : f32 to vector<98x1xf32>
    %42 = arith.addf %38, %41 : vector<98x1xf32>
    %43 = arith.mulf %40, %42 : vector<98x1xf32>
    %44 = arith.divf %37, %43 : vector<98x1xf32>
    %45 = tpu.concatenate %44, %44, %44, %44, %44, %44, %44, %44 in 0 : vector<98x1xf32>, vector<98x1xf32>, vector<98x1xf32>, vector<98x1xf32>, vector<98x1xf32>, vector<98x1xf32>, vector<98x1xf32>, vector<98x1xf32> -> vector<784x1xf32>
    %c0_15 = arith.constant 0 : index
    %c0_16 = arith.constant 0 : index
    %46 = vector.load %arg6[%c0_15, %c0_16] : memref<16x784xf32, #tpu.memory_space<vmem>>, vector<16x784xf32>
    %47 = vector.broadcast %45 : vector<784x1xf32> to vector<784x49xf32>
    %48 = arith.mulf %47, %7 : vector<784x49xf32>
    %cst_17 = arith.constant dense<0.000000e+00> : vector<16x49xf32>
    %49 = tpu.matmul %46, %48, %cst_17 {dimension_numbers = #tpu.dot_dimension_numbers<[1], [0], [0], [1], [0, 0, 1, 1], [], []>} : vector<16x784xf32>, vector<784x49xf32>, vector<16x49xf32> -> vector<16x49xf32>
    %50 = arith.mulf %6, %49 : vector<16x49xf32>
    %c0_18 = arith.constant 0 : index
    %c0_19 = arith.constant 0 : index
    %c0_20 = arith.constant 0 : index
    %51 = vector.load %arg7[%c0_18, %c0_19, %c0_20] : memref<1x16x49xf32, #tpu.memory_space<vmem>>, vector<1x16x49xf32>
    %52 = vector.shape_cast %51 : vector<1x16x49xf32> to vector<16x49xf32>
    %53 = vector.shape_cast %50 : vector<16x49xf32> to vector<1x16x49xf32>
    tpu.vector_store %arg7[%c0_18, %c0_19, %c0_20], %53 {strides = array<i32>} : memref<1x16x49xf32, #tpu.memory_space<vmem>>, vector<1x16x49xf32>,
    return
  }
  func.func @transform_0(%arg0: i32) -> (i32, i32, i32) {
    %c0_i32 = arith.constant 0 : i32
    %c0_i32_0 = arith.constant 0 : i32
    %c0_i32_1 = arith.constant 0 : i32
    return %arg0, %c0_i32, %c0_i32_0 : i32, i32, i32
  }
  func.func @transform_1(%arg0: i32) -> (i32, i32) {
    %c0_i32 = arith.constant 0 : i32
    %c0_i32_0 = arith.constant 0 : i32
    %c0_i32_1 = arith.constant 0 : i32
    return %c0_i32, %c0_i32_0 : i32, i32
  }
  func.func @transform_2(%arg0: i32) -> (i32, i32) {
    %c0_i32 = arith.constant 0 : i32
    %c0_i32_0 = arith.constant 0 : i32
    %c0_i32_1 = arith.constant 0 : i32
    return %c0_i32, %c0_i32_0 : i32, i32
  }
  func.func @transform_3(%arg0: i32) -> (i32, i32) {
    %c0_i32 = arith.constant 0 : i32
    %c0_i32_0 = arith.constant 0 : i32
    %c0_i32_1 = arith.constant 0 : i32
    return %c0_i32, %c0_i32_0 : i32, i32
  }
  func.func @transform_4(%arg0: i32) -> (i32, i32) {
    %c0_i32 = arith.constant 0 : i32
    %c0_i32_0 = arith.constant 0 : i32
    %c0_i32_1 = arith.constant 0 : i32
    return %c0_i32, %c0_i32_0 : i32, i32
  }
  func.func @transform_5(%arg0: i32) -> (i32, i32) {
    %c0_i32 = arith.constant 0 : i32
    %c0_i32_0 = arith.constant 0 : i32
    %c0_i32_1 = arith.constant 0 : i32
    return %c0_i32, %c0_i32_0 : i32, i32
  }
  func.func @transform_6(%arg0: i32) -> (i32, i32, i32) {
    %c0_i32 = arith.constant 0 : i32
    %c0_i32_0 = arith.constant 0 : i32
    %c0_i32_1 = arith.constant 0 : i32
    return %arg0, %c0_i32, %c0_i32_0 : i32, i32, i32
  }
}

</mosaic_0001>

<llo_original>
// kernel: primary_capsule_forward.1
$region0: #{primary_capsule_forward.1}
  #allocation0 [shape = 'u32[]', space=smem, size = 0x4, offset = 0x4, fixed_abs, tag = 'smem constant byte address 0x4 - core index']
  #allocation1 [shape = 'u32[144,128]{1,0:T(1,128)}', space=vmem, size = 0x12000, scoped, tag = 'internal scratch']
  %s0 = inlined_call_operand.vmem [shape: f32[2,36,49], index: 0, kind: input, shape index: {}]
  %s1 = inlined_call_operand.vmem [shape: f32[16,36], index: 1, kind: input, shape index: {}]
  %s2 = inlined_call_operand.vmem [shape: f32[16,1], index: 2, kind: input, shape index: {}]
  %s3 = inlined_call_operand.vmem [shape: f32[784,16], index: 3, kind: input, shape index: {}]
  %s4 = inlined_call_operand.vmem [shape: f32[784,49], index: 4, kind: input, shape index: {}]
  %s5 = inlined_call_operand.vmem [shape: f32[16,784], index: 5, kind: input, shape index: {}]
  %s6 = inlined_call_operand.vmem [shape: f32[2,16,49], index: 6, kind: output, shape index: {}]
  %s7 = sld [smem:[#allocation0]]
  $region57: #{primary_capsule_forward.1} parent=0
    _
  %s9 = ssub.s32 1, %s7
  %s10 = scalar_select 0, %s9, %s7
  loop: start=0, step=1, limit=4
  $region2: #{primary_capsule_forward.1} parent=0 // loop_pre_header
    _
  $region3: #{primary_capsule_forward.1} parent=0 // loop_header
    %s12 = sphi 0, %s16
    %p13 = scmp.ge.s32.totalorder %s12, 4
    %s22 = sphi 0, %s24
    %s25 = sphi 0, %s22
    %s26 = sphi 0, %s25
    %s42 = sphi 0, %s26
    %s46 = sphi 0, %s46
    %s48 = sphi 0, %s46
    %s49 = sphi 0, %s48
    %s63 = sphi 0, %s49
    %s67 = sphi 0, %s67
    %s69 = sphi 0, %s67
    %s70 = sphi 0, %s69
    %s84 = sphi 0, %s70
    %s88 = sphi 0, %s88
    %s90 = sphi 0, %s88
    %s91 = sphi 0, %s90
    %s105 = sphi 0, %s91
    %s109 = sphi 0, %s109
    %s111 = sphi 0, %s109
    %s112 = sphi 0, %s111
    %s126 = sphi 0, %s112
    %s130 = sphi 0, %s130
    %s132 = sphi 0, %s130
    %s133 = sphi 0, %s132
    %s147 = sphi 0, %s133
    %s153 = sphi 0, %s155
    %s156 = sphi 0, %s153
    %s157 = sphi 0, %s156
    %s173 = sphi 0, %s157
  $region4: #{primary_capsule_forward.1} parent=0 // loop_header_branch
    %15 = sbr.rel (%p13) target = $region8
  $region5: #{primary_capsule_forward.1} parent=0 // loop_body
    %s17 = ssub.s32 %s12, 1
    %s18 = ssub.s32 %s12, 2
    %s19 = sadd.s32 %s12, 1
    %s20 = ssub.s32 %s12, %s19
    %p21 = scmp.eq.s32.totalorder %s20, 0
    %s23 = sadd.s32 %s22, 1
    %s24 = scalar_select %p21, %s22, %s23
    %p27 = pneg %p21
    %p28 = scmp.eq.s32.totalorder %s12, 1
    %p29 = por %p27, %p28
    %p30 = scmp.ne.s32.totalorder %s22, %s25
    %p31 = scmp.eq.s32.totalorder %s12, 0
    %p32 = por %p30, %p31
    %p33 = scmp.ne.s32.totalorder %s22, %s25
    %p34 = scmp.eq.s32.totalorder %s17, 1
    %p35 = por %p33, %p34
    %p36 = scmp.ne.s32.totalorder %s25, %s26
    %p37 = scmp.eq.s32.totalorder %s17, 0
    %p38 = por %p36, %p37
    %p39 = scmp.ne.s32.totalorder %s25, %s26
    %p40 = scmp.eq.s32.totalorder %s18, 1
    %p41 = por %p39, %p40
    %p43 = scmp.ne.s32.totalorder %s26, %s42
    %p44 = scmp.eq.s32.totalorder %s18, 0
    %p45 = por %p43, %p44
    %s47 = sadd.s32 %s46, 1
    %p50 = scmp.eq.s32.totalorder %s12, 1
    %p51 = scmp.ne.s32.totalorder %s46, %s48
    %p52 = scmp.eq.s32.totalorder %s12, 0
    %p53 = por %p51, %p52
    %p54 = scmp.ne.s32.totalorder %s46, %s48
    %p55 = scmp.eq.s32.totalorder %s17, 1
    %p56 = por %p54, %p55
    %p57 = scmp.ne.s32.totalorder %s48, %s49
    %p58 = scmp.eq.s32.totalorder %s17, 0
    %p59 = por %p57, %p58
    %p60 = scmp.ne.s32.totalorder %s48, %s49
    %p61 = scmp.eq.s32.totalorder %s18, 1
    %p62 = por %p60, %p61
    %p64 = scmp.ne.s32.totalorder %s49, %s63
    %p65 = scmp.eq.s32.totalorder %s18, 0
    %p66 = por %p64, %p65
    %s68 = sadd.s32 %s67, 1
    %p71 = scmp.eq.s32.totalorder %s12, 1
    %p72 = scmp.ne.s32.totalorder %s67, %s69
    %p73 = scmp.eq.s32.totalorder %s12, 0
    %p74 = por %p72, %p73
    %p75 = scmp.ne.s32.totalorder %s67, %s69
    %p76 = scmp.eq.s32.totalorder %s17, 1
    %p77 = por %p75, %p76
    %p78 = scmp.ne.s32.totalorder %s69, %s70
    %p79 = scmp.eq.s32.totalorder %s17, 0
    %p80 = por %p78, %p79
    %p81 = scmp.ne.s32.totalorder %s69, %s70
    %p82 = scmp.eq.s32.totalorder %s18, 1
    %p83 = por %p81, %p82
    %p85 = scmp.ne.s32.totalorder %s70, %s84
    %p86 = scmp.eq.s32.totalorder %s18, 0
    %p87 = por %p85, %p86
    %s89 = sadd.s32 %s88, 1
    %p92 = scmp.eq.s32.totalorder %s12, 1
    %p93 = scmp.ne.s32.totalorder %s88, %s90
    %p94 = scmp.eq.s32.totalorder %s12, 0
    %p95 = por %p93, %p94
    %p96 = scmp.ne.s32.totalorder %s88, %s90
    %p97 = scmp.eq.s32.totalorder %s17, 1
    %p98 = por %p96, %p97
    %p99 = scmp.ne.s32.totalorder %s90, %s91
    %p100 = scmp.eq.s32.totalorder %s17, 0
    %p101 = por %p99, %p100
    %p102 = scmp.ne.s32.totalorder %s90, %s91
    %p103 = scmp.eq.s32.totalorder %s18, 1
    %p104 = por %p102, %p103
    %p106 = scmp.ne.s32.totalorder %s91, %s105
    %p107 = scmp.eq.s32.totalorder %s18, 0
    %p108 = por %p106, %p107
    %s110 = sadd.s32 %s109, 1
    %p113 = scmp.eq.s32.totalorder %s12, 1
    %p114 = scmp.ne.s32.totalorder %s109, %s111
    %p115 = scmp.eq.s32.totalorder %s12, 0
    %p116 = por %p114, %p115
    %p117 = scmp.ne.s32.totalorder %s109, %s111
    %p118 = scmp.eq.s32.totalorder %s17, 1
    %p119 = por %p117, %p118
    %p120 = scmp.ne.s32.totalorder %s111, %s112
    %p121 = scmp.eq.s32.totalorder %s17, 0
    %p122 = por %p120, %p121
    %p123 = scmp.ne.s32.totalorder %s111, %s112
    %p124 = scmp.eq.s32.totalorder %s18, 1
    %p125 = por %p123, %p124
    %p127 = scmp.ne.s32.totalorder %s112, %s126
    %p128 = scmp.eq.s32.totalorder %s18, 0
    %p129 = por %p127, %p128
    %s131 = sadd.s32 %s130, 1
    %p134 = scmp.eq.s32.totalorder %s12, 1
    %p135 = scmp.ne.s32.totalorder %s130, %s132
    %p136 = scmp.eq.s32.totalorder %s12, 0
    %p137 = por %p135, %p136
    %p138 = scmp.ne.s32.totalorder %s130, %s132
    %p139 = scmp.eq.s32.totalorder %s17, 1
    %p140 = por %p138, %p139
    %p141 = scmp.ne.s32.totalorder %s132, %s133
    %p142 = scmp.eq.s32.totalorder %s17, 0
    %p143 = por %p141, %p142
    %p144 = scmp.ne.s32.totalorder %s132, %s133
    %p145 = scmp.eq.s32.totalorder %s18, 1
    %p146 = por %p144, %p145
    %p148 = scmp.ne.s32.totalorder %s133, %s147
    %p149 = scmp.eq.s32.totalorder %s18, 0
    %p150 = por %p148, %p149
    %s151 = ssub.s32 %s12, %s19
    %p152 = scmp.eq.s32.totalorder %s151, 0
    %s154 = sadd.s32 %s153, 1
    %s155 = scalar_select %p152, %s153, %s154
    %p158 = pneg %p152
    %p159 = scmp.eq.s32.totalorder %s12, 1
    %p160 = por %p158, %p159
    %p161 = scmp.ne.s32.totalorder %s153, %s156
    %p162 = scmp.eq.s32.totalorder %s12, 0
    %p163 = por %p161, %p162
    %p164 = scmp.ne.s32.totalorder %s153, %s156
    %p165 = scmp.eq.s32.totalorder %s17, 1
    %p166 = por %p164, %p165
    %p167 = scmp.ne.s32.totalorder %s156, %s157
    %p168 = scmp.eq.s32.totalorder %s17, 0
    %p169 = por %p167, %p168
    %p170 = scmp.ne.s32.totalorder %s156, %s157
    %p171 = scmp.eq.s32.totalorder %s18, 1
    %p172 = por %p170, %p171
    %p174 = scmp.ne.s32.totalorder %s157, %s173
    %p175 = scmp.eq.s32.totalorder %s18, 0
    %p176 = por %p174, %p175
    %p177 = scmp.le.s32.totalorder 1, %s12
    %p178 = scmp.lt.s32.totalorder %s12, 3
    %p179 = pnand %p177, %p178
    %p180 = pneg %p179
    // Predicated region
    $region9: #{primary_capsule_forward.1} parent=5 // pred_check
      _
    $region10: #{primary_capsule_forward.1} parent=5 // pred_check_branch
      %182 = sbr.rel (%p179) target = $region12
    $region11: #{primary_capsule_forward.1} parent=5 // pred_region
      %s183 = ssub.s32 %s12, 1
      // Predicated region
      $region13: #{primary_capsule_forward.1} parent=11 // pred_check
        %p184 = pneg %p59
      $region14: #{primary_capsule_forward.1} parent=11 // pred_check_branch
        %186 = sbr.rel (%p184) target = $region16
      $region15: #{primary_capsule_forward.1} parent=11 // pred_region
        _
      $region16: #{primary_capsule_forward.1} parent=11 // pred_fallthru
        _
      // Predicated region
      $region17: #{primary_capsule_forward.1} parent=11 // pred_check
        %p187 = pneg %p80
      $region18: #{primary_capsule_forward.1} parent=11 // pred_check_branch
        %189 = sbr.rel (%p187) target = $region20
      $region19: #{primary_capsule_forward.1} parent=11 // pred_region
        _
      $region20: #{primary_capsule_forward.1} parent=11 // pred_fallthru
        _
      // Predicated region
      $region21: #{primary_capsule_forward.1} parent=11 // pred_check
        %p190 = pneg %p101
      $region22: #{primary_capsule_forward.1} parent=11 // pred_check_branch
        %192 = sbr.rel (%p190) target = $region24
      $region23: #{primary_capsule_forward.1} parent=11 // pred_region
        _
      $region24: #{primary_capsule_forward.1} parent=11 // pred_fallthru
        _
      // Predicated region
      $region25: #{primary_capsule_forward.1} parent=11 // pred_check
        %p193 = pneg %p122
      $region26: #{primary_capsule_forward.1} parent=11 // pred_check_branch
        %195 = sbr.rel (%p193) target = $region28
      $region27: #{primary_capsule_forward.1} parent=11 // pred_region
        _
      $region28: #{primary_capsule_forward.1} parent=11 // pred_fallthru
        _
      // Predicated region
      $region29: #{primary_capsule_forward.1} parent=11 // pred_check
        %p196 = pneg %p143
      $region30: #{primary_capsule_forward.1} parent=11 // pred_check_branch
        %198 = sbr.rel (%p196) target = $region32
      $region31: #{primary_capsule_forward.1} parent=11 // pred_region
        _
      $region32: #{primary_capsule_forward.1} parent=11 // pred_fallthru
        _
    $region12: #{primary_capsule_forward.1} parent=5 // pred_fallthru
      _
    %p199 = scmp.lt.s32.totalorder %s12, 2
    // Predicated region
    $region33: #{primary_capsule_forward.1} parent=5 // pred_check
      %p200 = pneg %p199
    $region34: #{primary_capsule_forward.1} parent=5 // pred_check_branch
      %202 = sbr.rel (%p200) target = $region36
    $region35: #{primary_capsule_forward.1} parent=5 // pred_region
      // Predicated region
      $region37: #{primary_capsule_forward.1} parent=35 // pred_check
        %p203 = pneg %p32
      $region38: #{primary_capsule_forward.1} parent=35 // pred_check_branch
        %205 = sbr.rel (%p203) target = $region40
      $region39: #{primary_capsule_forward.1} parent=35 // pred_region
        %p206 = scmp.lt.s32.totalorder %s12, 1
        %s207 = scalar_select %p206, %s12, 1
        %s208 = smul.addr %s207, 5
        %s209 = smul.addr %s208, 8
        %s210 = scalar_lea.vmem %s0, %s209
      $region40: #{primary_capsule_forward.1} parent=35 // pred_fallthru
        _
    $region36: #{primary_capsule_forward.1} parent=5 // pred_fallthru
      _
    %p211 = scmp.le.s32.totalorder 1, %s12
    %p212 = scmp.lt.s32.totalorder %s12, 3
    %p213 = pnand %p211, %p212
    %p214 = pneg %p213
    // Predicated region
    $region41: #{primary_capsule_forward.1} parent=5 // pred_check
      _
    $region42: #{primary_capsule_forward.1} parent=5 // pred_check_branch
      %216 = sbr.rel (%p213) target = $region44
    $region43: #{primary_capsule_forward.1} parent=5 // pred_region
      %s217 = ssub.s32 %s12, 1
      %p218 = scmp.lt.s32.totalorder %s17, 1
      %s219 = scalar_select %p218, %s17, 1
      %s220 = smul.addr %s219, 5
      %s221 = smul.addr %s220, 8
      %s222 = scalar_lea.vmem %s0, %s221
      %p223 = pneg %p38
      %p224 = pneg %p35
      %p225 = pneg %p59
      %p226 = pneg %p56
      %p227 = pneg %p80
      %p228 = pneg %p77
      %p229 = pneg %p101
      %p230 = pneg %p98
      %p231 = pneg %p122
      %p232 = pneg %p119
      %p233 = pneg %p143
      %p234 = pneg %p140
      %p235 = pneg %p169
      %p236 = pneg %p166
      %p237 = scmp.lt.s32.totalorder %s17, 1
      %s238 = scalar_select %p237, %s17, 1
      %s239 = smul.addr %s238, 2
      %s240 = smul.addr %s239, 8
      %s241 = scalar_lea.vmem %s6, %s240
      %p242 = scmp.lt.s32.totalorder %s17, 1
      %s243 = scalar_select %p242, %s17, 1
      %s244 = smul.addr %s243, 5
      %s245 = smul.addr %s244, 8
      %s246 = scalar_lea.vmem %s0, %s245
      %p247 = scmp.lt.s32.totalorder %s17, 1
      %s248 = scalar_select %p247, %s17, 1
      %s249 = smul.addr %s248, 2
      %s250 = smul.addr %s249, 8
      %s251 = scalar_lea.vmem %s6, %s250
      %v252 = vld [vmem:[%s1] sm:$0xff]
      %v253 = vld [vmem:[%s1 + $0x8] sm:$0xff]
      %v254 = vld [vmem:[%s246] sm:$0xff]
      %v255 = vld [vmem:[%s246 + $0x8] sm:$0xff]
      %v256 = vld [vmem:[%s246 + $0x10] sm:$0xff]
      %v257 = vld [vmem:[%s246 + $0x18] sm:$0xff]
      %v258 = vld [vmem:[%s246 + $0x20] sm:$0xf]
      %v259 = vld [vmem:[%s2] sm:$0xff]
      %v260 = vld [vmem:[%s2 + $0x8] sm:$0xff]
      %262 = vset.pattern.permute.xlu0 0
      %263 = vperm.xlu0 %262, %v259
      %v264 = vpop.permute.xlu0 %263
      %267 = vset.pattern.permute.xlu0 0
      %268 = vperm.xlu0 %267, %v260
      %v269 = vpop.permute.xlu0 %268
      %vm271 = vcmask 293888
      %v273 = vsel %vm271, %v252, 0
      %v276 = vsel %vm271, %v253, 0
      %vm278 = vcmask 1043456
      %v280 = vsel %vm278, %v258, 0
      %282 = vmatprep.subr.mxu0 0.0
      %283 = vmatpush1.msra.mxu0 %v254
      %284 = vmatprep.subr.mxu0 0.0
      %285 = vmatpush1.msra.mxu0 %v255
      %286 = vmatprep.subr.mxu0 0.0
      %287 = vmatpush1.msra.mxu0 %v256
      %288 = vmatprep.subr.mxu0 0.0
      %289 = vmatpush1.msra.mxu0 %v257
      %290 = vmatprep.subr.mxu0 0.0
      %291 = vmatpush1.msra.mxu0 %v280
      %292 = vmatprep.subr.mxu0 0.0
      %293 = vmatpush1.msra.mxu0 0.0
      %294 = vmatprep.subr.mxu0 0.0
      %295 = vmatpush1.msra.mxu0 0.0
      %296 = vmatprep.subr.mxu0 0.0
      %297 = vmatpush1.msra.mxu0 0.0
      %298 = vmatprep.subr.mxu0 0.0
      %299 = vmatpush1.msra.mxu0 0.0
      %300 = vmatprep.subr.mxu0 0.0
      %301 = vmatpush1.msra.mxu0 0.0
      %302 = vmatprep.subr.mxu0 0.0
      %303 = vmatpush1.msra.mxu0 0.0
      %304 = vmatprep.subr.mxu0 0.0
      %305 = vmatpush1.msra.mxu0 0.0
      %306 = vmatprep.subr.mxu0 0.0
      %307 = vmatpush1.msra.mxu0 0.0
      %308 = vmatprep.subr.mxu0 0.0
      %309 = vmatpush1.msra.mxu0 0.0
      %310 = vmatprep.subr.mxu0 0.0
      %311 = vmatpush1.msra.mxu0 0.0
      %312 = vmatprep.subr.mxu0 0.0
      %313 = vmatpush1.msra.mxu0 0.0
      %314 = vmatprep.subr.mxu0 0.0
      %315 = vmatpush1.msra.mxu0 0.0
      %316 = vmatprep.subr.mxu0 0.0
      %317 = vmatpush1.msra.mxu0 0.0
      %318 = vmatprep.subr.mxu0 0.0
      %319 = vmatpush1.msra.mxu0 0.0
      %320 = vmatprep.subr.mxu0 0.0
      %321 = vmatpush1.msra.mxu0 0.0
      %322 = vmatprep.subr.mxu0 0.0
      %323 = vmatpush1.msra.mxu0 0.0
      %324 = vmatprep.subr.mxu0 0.0
      %325 = vmatpush1.msra.mxu0 0.0
      %326 = vmatprep.subr.mxu0 0.0
      %327 = vmatpush1.msra.mxu0 0.0
      %328 = vmatprep.subr.mxu0 0.0
      %329 = vmatpush1.msra.mxu0 0.0
      %330 = vmatprep.subr.mxu0 0.0
      %331 = vmatpush1.msra.mxu0 0.0
      %332 = vmatprep.subr.mxu0 0.0
      %333 = vmatpush1.msra.mxu0 0.0
      %334 = vmatprep.subr.mxu0 0.0
      %335 = vmatpush1.msra.mxu0 0.0
      %336 = vmatprep.subr.mxu0 0.0
      %337 = vmatpush1.msra.mxu0 0.0
      %338 = vmatprep.subr.mxu0 0.0
      %339 = vmatpush1.msra.mxu0 0.0
      %340 = vmatprep.subr.mxu0 0.0
      %341 = vmatpush1.msra.mxu0 0.0
      %342 = vmatprep.subr.mxu0 0.0
      %343 = vmatpush1.msra.mxu0 0.0
      %344 = vmatprep.subr.mxu0 0.0
      %345 = vmatpush1.msra.mxu0 0.0
      %346 = vmatprep.mubr.f32.mxu0 0.0
      %347 = vmatmul.mubr.f32.gmra.mrb[0].mxu0 %v273
      %v348 = vpop.f32.mrb[0].mxu0
      %v349 = vadd.f32 %v264, %v348
      %v350 = vpop.f32.mrb[0].mxu0
      %351 = vmatprep.mubr.f32.mxu0 0.0
      %352 = vmatmul.mubr.f32.gmra.mrb[0].mxu0 %v276
      %v353 = vpop.f32.mrb[0].mxu0
      %v354 = vadd.f32 %v269, %v353
      %v355 = vpop.f32.mrb[0].mxu0
      %356 = vdwg.mxu0
      %v357 = vld [vmem:[%s4] sm:$0xff]
      %v358 = vld [vmem:[%s4 + $0x8] sm:$0xff]
      %v359 = vld [vmem:[%s4 + $0x10] sm:$0xff]
      %v360 = vld [vmem:[%s4 + $0x18] sm:$0xff]
      %v361 = vld [vmem:[%s4 + $0x20] sm:$0xff]
      %v362 = vld [vmem:[%s4 + $0x28] sm:$0xff]
      %v363 = vld [vmem:[%s4 + $0x30] sm:$0xff]
      %v364 = vld [vmem:[%s4 + $0x38] sm:$0xff]
      %v365 = vld [vmem:[%s4 + $0x40] sm:$0xff]
      %v366 = vld [vmem:[%s4 + $0x48] sm:$0xff]
      %v367 = vld [vmem:[%s4 + $0x50] sm:$0xff]
      %v368 = vld [vmem:[%s4 + $0x58] sm:$0xff]
      %v369 = vld [vmem:[%s4 + $0x60] sm:$0xff]
      %v370 = vld [vmem:[%s4 + $0x68] sm:$0xff]
      %v371 = vld [vmem:[%s4 + $0x70] sm:$0xff]
      %v372 = vld [vmem:[%s4 + $0x78] sm:$0xff]
      %v373 = vld [vmem:[%s4 + $0x80] sm:$0xff]
      %v374 = vld [vmem:[%s4 + $0x88] sm:$0xff]
      %v375 = vld [vmem:[%s4 + $0x90] sm:$0xff]
      %v376 = vld [vmem:[%s4 + $0x98] sm:$0xff]
      %v377 = vld [vmem:[%s4 + $0xa0] sm:$0xff]
      %v378 = vld [vmem:[%s4 + $0xa8] sm:$0xff]
      %v379 = vld [vmem:[%s4 + $0xb0] sm:$0xff]
      %v380 = vld [vmem:[%s4 + $0xb8] sm:$0xff]
      %v381 = vld [vmem:[%s4 + $0xc0] sm:$0xff]
      %v382 = vld [vmem:[%s4 + $0xc8] sm:$0xff]
      %v383 = vld [vmem:[%s4 + $0xd0] sm:$0xff]
      %v384 = vld [vmem:[%s4 + $0xd8] sm:$0xff]
      %v385 = vld [vmem:[%s4 + $0xe0] sm:$0xff]
      %v386 = vld [vmem:[%s4 + $0xe8] sm:$0xff]
      %v387 = vld [vmem:[%s4 + $0xf0] sm:$0xff]
      %v388 = vld [vmem:[%s4 + $0xf8] sm:$0xff]
      %v389 = vld [vmem:[%s4 + $0x100] sm:$0xff]
      %v390 = vld [vmem:[%s4 + $0x108] sm:$0xff]
      %v391 = vld [vmem:[%s4 + $0x110] sm:$0xff]
      %v392 = vld [vmem:[%s4 + $0x118] sm:$0xff]
      %v393 = vld [vmem:[%s4 + $0x120] sm:$0xff]
      %v394 = vld [vmem:[%s4 + $0x128] sm:$0xff]
      %v395 = vld [vmem:[%s4 + $0x130] sm:$0xff]
      %v396 = vld [vmem:[%s4 + $0x138] sm:$0xff]
      %v397 = vld [vmem:[%s4 + $0x140] sm:$0xff]
      %v398 = vld [vmem:[%s4 + $0x148] sm:$0xff]
      %v399 = vld [vmem:[%s4 + $0x150] sm:$0xff]
      %v400 = vld [vmem:[%s4 + $0x158] sm:$0xff]
      %v401 = vld [vmem:[%s4 + $0x160] sm:$0xff]
      %v402 = vld [vmem:[%s4 + $0x168] sm:$0xff]
      %v403 = vld [vmem:[%s4 + $0x170] sm:$0xff]
      %v404 = vld [vmem:[%s4 + $0x178] sm:$0xff]
      %v405 = vld [vmem:[%s4 + $0x180] sm:$0xff]
      %v406 = vld [vmem:[%s4 + $0x188] sm:$0xff]
      %v407 = vld [vmem:[%s4 + $0x190] sm:$0xff]
      %v408 = vld [vmem:[%s4 + $0x198] sm:$0xff]
      %v409 = vld [vmem:[%s4 + $0x1a0] sm:$0xff]
      %v410 = vld [vmem:[%s4 + $0x1a8] sm:$0xff]
      %v411 = vld [vmem:[%s4 + $0x1b0] sm:$0xff]
      %v412 = vld [vmem:[%s4 + $0x1b8] sm:$0xff]
      %v413 = vld [vmem:[%s4 + $0x1c0] sm:$0xff]
      %v414 = vld [vmem:[%s4 + $0x1c8] sm:$0xff]
      %v415 = vld [vmem:[%s4 + $0x1d0] sm:$0xff]
      %v416 = vld [vmem:[%s4 + $0x1d8] sm:$0xff]
      %v417 = vld [vmem:[%s4 + $0x1e0] sm:$0xff]
      %v418 = vld [vmem:[%s4 + $0x1e8] sm:$0xff]
      %v419 = vld [vmem:[%s4 + $0x1f0] sm:$0xff]
      %v420 = vld [vmem:[%s4 + $0x1f8] sm:$0xff]
      %v421 = vld [vmem:[%s4 + $0x200] sm:$0xff]
      %v422 = vld [vmem:[%s4 + $0x208] sm:$0xff]
      %v423 = vld [vmem:[%s4 + $0x210] sm:$0xff]
      %v424 = vld [vmem:[%s4 + $0x218] sm:$0xff]
      %v425 = vld [vmem:[%s4 + $0x220] sm:$0xff]
      %v426 = vld [vmem:[%s4 + $0x228] sm:$0xff]
      %v427 = vld [vmem:[%s4 + $0x230] sm:$0xff]
      %v428 = vld [vmem:[%s4 + $0x238] sm:$0xff]
      %v429 = vld [vmem:[%s4 + $0x240] sm:$0xff]
      %v430 = vld [vmem:[%s4 + $0x248] sm:$0xff]
      %v431 = vld [vmem:[%s4 + $0x250] sm:$0xff]
      %v432 = vld [vmem:[%s4 + $0x258] sm:$0xff]
      %v433 = vld [vmem:[%s4 + $0x260] sm:$0xff]
      %v434 = vld [vmem:[%s4 + $0x268] sm:$0xff]
      %v435 = vld [vmem:[%s4 + $0x270] sm:$0xff]
      %v436 = vld [vmem:[%s4 + $0x278] sm:$0xff]
      %v437 = vld [vmem:[%s4 + $0x280] sm:$0xff]
      %v438 = vld [vmem:[%s4 + $0x288] sm:$0xff]
      %v439 = vld [vmem:[%s4 + $0x290] sm:$0xff]
      %v440 = vld [vmem:[%s4 + $0x298] sm:$0xff]
      %v441 = vld [vmem:[%s4 + $0x2a0] sm:$0xff]
      %v442 = vld [vmem:[%s4 + $0x2a8] sm:$0xff]
      %v443 = vld [vmem:[%s4 + $0x2b0] sm:$0xff]
      %v444 = vld [vmem:[%s4 + $0x2b8] sm:$0xff]
      %v445 = vld [vmem:[%s4 + $0x2c0] sm:$0xff]
      %v446 = vld [vmem:[%s4 + $0x2c8] sm:$0xff]
      %v447 = vld [vmem:[%s4 + $0x2d0] sm:$0xff]
      %v448 = vld [vmem:[%s4 + $0x2d8] sm:$0xff]
      %v449 = vld [vmem:[%s4 + $0x2e0] sm:$0xff]
      %v450 = vld [vmem:[%s4 + $0x2e8] sm:$0xff]
      %v451 = vld [vmem:[%s4 + $0x2f0] sm:$0xff]
      %v452 = vld [vmem:[%s4 + $0x2f8] sm:$0xff]
      %v453 = vld [vmem:[%s4 + $0x300] sm:$0xff]
      %v454 = vld [vmem:[%s4 + $0x308] sm:$0xff]
      %v455 = vld [vmem:[%s3] sm:$0xff]
      %v456 = vld [vmem:[%s3 + $0x8] sm:$0xff]
      %v457 = vld [vmem:[%s3 + $0x10] sm:$0xff]
      %v458 = vld [vmem:[%s3 + $0x18] sm:$0xff]
      %v459 = vld [vmem:[%s3 + $0x20] sm:$0xff]
      %v460 = vld [vmem:[%s3 + $0x28] sm:$0xff]
      %v461 = vld [vmem:[%s3 + $0x30] sm:$0xff]
      %v462 = vld [vmem:[%s3 + $0x38] sm:$0xff]
      %v463 = vld [vmem:[%s3 + $0x40] sm:$0xff]
      %v464 = vld [vmem:[%s3 + $0x48] sm:$0xff]
      %v465 = vld [vmem:[%s3 + $0x50] sm:$0xff]
      %v466 = vld [vmem:[%s3 + $0x58] sm:$0xff]
      %v467 = vld [vmem:[%s3 + $0x60] sm:$0xff]
      %v468 = vld [vmem:[%s3 + $0x68] sm:$0xff]
      %v469 = vld [vmem:[%s3 + $0x70] sm:$0xff]
      %v470 = vld [vmem:[%s3 + $0x78] sm:$0xff]
      %v471 = vld [vmem:[%s3 + $0x80] sm:$0xff]
      %v472 = vld [vmem:[%s3 + $0x88] sm:$0xff]
      %v473 = vld [vmem:[%s3 + $0x90] sm:$0xff]
      %v474 = vld [vmem:[%s3 + $0x98] sm:$0xff]
      %v475 = vld [vmem:[%s3 + $0xa0] sm:$0xff]
      %v476 = vld [vmem:[%s3 + $0xa8] sm:$0xff]
      %v477 = vld [vmem:[%s3 + $0xb0] sm:$0xff]
      %v478 = vld [vmem:[%s3 + $0xb8] sm:$0xff]
      %v479 = vld [vmem:[%s3 + $0xc0] sm:$0xff]
      %v480 = vld [vmem:[%s3 + $0xc8] sm:$0xff]
      %v481 = vld [vmem:[%s3 + $0xd0] sm:$0xff]
      %v482 = vld [vmem:[%s3 + $0xd8] sm:$0xff]
      %v483 = vld [vmem:[%s3 + $0xe0] sm:$0xff]
      %v484 = vld [vmem:[%s3 + $0xe8] sm:$0xff]
      %v485 = vld [vmem:[%s3 + $0xf0] sm:$0xff]
      %v486 = vld [vmem:[%s3 + $0xf8] sm:$0xff]
      %v487 = vld [vmem:[%s3 + $0x100] sm:$0xff]
      %v488 = vld [vmem:[%s3 + $0x108] sm:$0xff]
      %v489 = vld [vmem:[%s3 + $0x110] sm:$0xff]
      %v490 = vld [vmem:[%s3 + $0x118] sm:$0xff]
      %v491 = vld [vmem:[%s3 + $0x120] sm:$0xff]
      %v492 = vld [vmem:[%s3 + $0x128] sm:$0xff]
      %v493 = vld [vmem:[%s3 + $0x130] sm:$0xff]
      %v494 = vld [vmem:[%s3 + $0x138] sm:$0xff]
      %v495 = vld [vmem:[%s3 + $0x140] sm:$0xff]
      %v496 = vld [vmem:[%s3 + $0x148] sm:$0xff]
      %v497 = vld [vmem:[%s3 + $0x150] sm:$0xff]
      %v498 = vld [vmem:[%s3 + $0x158] sm:$0xff]
      %v499 = vld [vmem:[%s3 + $0x160] sm:$0xff]
      %v500 = vld [vmem:[%s3 + $0x168] sm:$0xff]
      %v501 = vld [vmem:[%s3 + $0x170] sm:$0xff]
      %v502 = vld [vmem:[%s3 + $0x178] sm:$0xff]
      %v503 = vld [vmem:[%s3 + $0x180] sm:$0xff]
      %v504 = vld [vmem:[%s3 + $0x188] sm:$0xff]
      %v505 = vld [vmem:[%s3 + $0x190] sm:$0xff]
      %v506 = vld [vmem:[%s3 + $0x198] sm:$0xff]
      %v507 = vld [vmem:[%s3 + $0x1a0] sm:$0xff]
      %v508 = vld [vmem:[%s3 + $0x1a8] sm:$0xff]
      %v509 = vld [vmem:[%s3 + $0x1b0] sm:$0xff]
      %v510 = vld [vmem:[%s3 + $0x1b8] sm:$0xff]
      %v511 = vld [vmem:[%s3 + $0x1c0] sm:$0xff]
      %v512 = vld [vmem:[%s3 + $0x1c8] sm:$0xff]
      %v513 = vld [vmem:[%s3 + $0x1d0] sm:$0xff]
      %v514 = vld [vmem:[%s3 + $0x1d8] sm:$0xff]
      %v515 = vld [vmem:[%s3 + $0x1e0] sm:$0xff]
      %v516 = vld [vmem:[%s3 + $0x1e8] sm:$0xff]
      %v517 = vld [vmem:[%s3 + $0x1f0] sm:$0xff]
      %v518 = vld [vmem:[%s3 + $0x1f8] sm:$0xff]
      %v519 = vld [vmem:[%s3 + $0x200] sm:$0xff]
      %v520 = vld [vmem:[%s3 + $0x208] sm:$0xff]
      %v521 = vld [vmem:[%s3 + $0x210] sm:$0xff]
      %v522 = vld [vmem:[%s3 + $0x218] sm:$0xff]
      %v523 = vld [vmem:[%s3 + $0x220] sm:$0xff]
      %v524 = vld [vmem:[%s3 + $0x228] sm:$0xff]
      %v525 = vld [vmem:[%s3 + $0x230] sm:$0xff]
      %v526 = vld [vmem:[%s3 + $0x238] sm:$0xff]
      %v527 = vld [vmem:[%s3 + $0x240] sm:$0xff]
      %v528 = vld [vmem:[%s3 + $0x248] sm:$0xff]
      %v529 = vld [vmem:[%s3 + $0x250] sm:$0xff]
      %v530 = vld [vmem:[%s3 + $0x258] sm:$0xff]
      %v531 = vld [vmem:[%s3 + $0x260] sm:$0xff]
      %v532 = vld [vmem:[%s3 + $0x268] sm:$0xff]
      %v533 = vld [vmem:[%s3 + $0x270] sm:$0xff]
      %v534 = vld [vmem:[%s3 + $0x278] sm:$0xff]
      %v535 = vld [vmem:[%s3 + $0x280] sm:$0xff]
      %v536 = vld [vmem:[%s3 + $0x288] sm:$0xff]
      %v537 = vld [vmem:[%s3 + $0x290] sm:$0xff]
      %v538 = vld [vmem:[%s3 + $0x298] sm:$0xff]
      %v539 = vld [vmem:[%s3 + $0x2a0] sm:$0xff]
      %v540 = vld [vmem:[%s3 + $0x2a8] sm:$0xff]
      %v541 = vld [vmem:[%s3 + $0x2b0] sm:$0xff]
      %v542 = vld [vmem:[%s3 + $0x2b8] sm:$0xff]
      %v543 = vld [vmem:[%s3 + $0x2c0] sm:$0xff]
      %v544 = vld [vmem:[%s3 + $0x2c8] sm:$0xff]
      %v545 = vld [vmem:[%s3 + $0x2d0] sm:$0xff]
      %v546 = vld [vmem:[%s3 + $0x2d8] sm:$0xff]
      %v547 = vld [vmem:[%s3 + $0x2e0] sm:$0xff]
      %v548 = vld [vmem:[%s3 + $0x2e8] sm:$0xff]
      %v549 = vld [vmem:[%s3 + $0x2f0] sm:$0xff]
      %v550 = vld [vmem:[%s3 + $0x2f8] sm:$0xff]
      %v551 = vld [vmem:[%s3 + $0x300] sm:$0xff]
      %v552 = vld [vmem:[%s3 + $0x308] sm:$0xff]
      %vm553 = vcmask 130048
      %v555 = vsel %vm553, %v455, 0
      %v558 = vsel %vm553, %v456, 0
      %v561 = vsel %vm553, %v457, 0
      %v564 = vsel %vm553, %v458, 0
      %v567 = vsel %vm553, %v459, 0
      %v570 = vsel %vm553, %v460, 0
      %v573 = vsel %vm553, %v461, 0
      %v576 = vsel %vm553, %v462, 0
      %v579 = vsel %vm553, %v463, 0
      %v582 = vsel %vm553, %v464, 0
      %v585 = vsel %vm553, %v465, 0
      %v588 = vsel %vm553, %v466, 0
      %v591 = vsel %vm553, %v467, 0
      %v594 = vsel %vm553, %v468, 0
      %v597 = vsel %vm553, %v469, 0
      %v600 = vsel %vm553, %v470, 0
      %v603 = vsel %vm553, %v471, 0
      %v606 = vsel %vm553, %v472, 0
      %v609 = vsel %vm553, %v473, 0
      %v612 = vsel %vm553, %v474, 0
      %v615 = vsel %vm553, %v475, 0
      %v618 = vsel %vm553, %v476, 0
      %v621 = vsel %vm553, %v477, 0
      %v624 = vsel %vm553, %v478, 0
      %v627 = vsel %vm553, %v479, 0
      %v630 = vsel %vm553, %v480, 0
      %v633 = vsel %vm553, %v481, 0
      %v636 = vsel %vm553, %v482, 0
      %v639 = vsel %vm553, %v483, 0
      %v642 = vsel %vm553, %v484, 0
      %v645 = vsel %vm553, %v485, 0
      %v648 = vsel %vm553, %v486, 0
      %v651 = vsel %vm553, %v487, 0
      %v654 = vsel %vm553, %v488, 0
      %v657 = vsel %vm553, %v489, 0
      %v660 = vsel %vm553, %v490, 0
      %v663 = vsel %vm553, %v491, 0
      %v666 = vsel %vm553, %v492, 0
      %v669 = vsel %vm553, %v493, 0
      %v672 = vsel %vm553, %v494, 0
      %v675 = vsel %vm553, %v495, 0
      %v678 = vsel %vm553, %v496, 0
      %v681 = vsel %vm553, %v497, 0
      %v684 = vsel %vm553, %v498, 0
      %v687 = vsel %vm553, %v499, 0
      %v690 = vsel %vm553, %v500, 0
      %v693 = vsel %vm553, %v501, 0
      %v696 = vsel %vm553, %v502, 0
      %v699 = vsel %vm553, %v503, 0
      %v702 = vsel %vm553, %v504, 0
      %v705 = vsel %vm553, %v505, 0
      %v708 = vsel %vm553, %v506, 0
      %v711 = vsel %vm553, %v507, 0
      %v714 = vsel %vm553, %v508, 0
      %v717 = vsel %vm553, %v509, 0
      %v720 = vsel %vm553, %v510, 0
      %v723 = vsel %vm553, %v511, 0
      %v726 = vsel %vm553, %v512, 0
      %v729 = vsel %vm553, %v513, 0
      %v732 = vsel %vm553, %v514, 0
      %v735 = vsel %vm553, %v515, 0
      %v738 = vsel %vm553, %v516, 0
      %v741 = vsel %vm553, %v517, 0
      %v744 = vsel %vm553, %v518, 0
      %v747 = vsel %vm553, %v519, 0
      %v750 = vsel %vm553, %v520, 0
      %v753 = vsel %vm553, %v521, 0
      %v756 = vsel %vm553, %v522, 0
      %v759 = vsel %vm553, %v523, 0
      %v762 = vsel %vm553, %v524, 0
      %v765 = vsel %vm553, %v525, 0
      %v768 = vsel %vm553, %v526, 0
      %v771 = vsel %vm553, %v527, 0
      %v774 = vsel %vm553, %v528, 0
      %v777 = vsel %vm553, %v529, 0
      %v780 = vsel %vm553, %v530, 0
      %v783 = vsel %vm553, %v531, 0
      %v786 = vsel %vm553, %v532, 0
      %v789 = vsel %vm553, %v533, 0
      %v792 = vsel %vm553, %v534, 0
      %v795 = vsel %vm553, %v535, 0
      %v798 = vsel %vm553, %v536, 0
      %v801 = vsel %vm553, %v537, 0
      %v804 = vsel %vm553, %v538, 0
      %v807 = vsel %vm553, %v539, 0
      %v810 = vsel %vm553, %v540, 0
      %v813 = vsel %vm553, %v541, 0
      %v816 = vsel %vm553, %v542, 0
      %v819 = vsel %vm553, %v543, 0
      %v822 = vsel %vm553, %v544, 0
      %v825 = vsel %vm553, %v545, 0
      %v828 = vsel %vm553, %v546, 0
      %v831 = vsel %vm553, %v547, 0
      %v834 = vsel %vm553, %v548, 0
      %v837 = vsel %vm553, %v549, 0
      %v840 = vsel %vm553, %v550, 0
      %v843 = vsel %vm553, %v551, 0
      %v846 = vsel %vm553, %v552, 0
      %848 = vmatprep.subr.mxu0 0.0
      %849 = vmatpush1.msra.mxu0 %v349
      %850 = vmatprep.subr.mxu0 0.0
      %851 = vmatpush1.msra.mxu0 %v354
      %852 = vmatprep.subr.mxu0 0.0
      %853 = vmatpush1.msra.mxu0 0.0
      %854 = vmatprep.subr.mxu0 0.0
      %855 = vmatpush1.msra.mxu0 0.0
      %856 = vmatprep.subr.mxu0 0.0
      %857 = vmatpush1.msra.mxu0 0.0
      %858 = vmatprep.subr.mxu0 0.0
      %859 = vmatpush1.msra.mxu0 0.0
      %860 = vmatprep.subr.mxu0 0.0
      %861 = vmatpush1.msra.mxu0 0.0
      %862 = vmatprep.subr.mxu0 0.0
      %863 = vmatpush1.msra.mxu0 0.0
      %864 = vmatprep.subr.mxu0 0.0
      %865 = vmatpush1.msra.mxu0 0.0
      %866 = vmatprep.subr.mxu0 0.0
      %867 = vmatpush1.msra.mxu0 0.0
      %868 = vmatprep.subr.mxu0 0.0
      %869 = vmatpush1.msra.mxu0 0.0
      %870 = vmatprep.subr.mxu0 0.0
      %871 = vmatpush1.msra.mxu0 0.0
      %872 = vmatprep.subr.mxu0 0.0
      %873 = vmatpush1.msra.mxu0 0.0
      %874 = vmatprep.subr.mxu0 0.0
      %875 = vmatpush1.msra.mxu0 0.0
      %876 = vmatprep.subr.mxu0 0.0
      %877 = vmatpush1.msra.mxu0 0.0
      %878 = vmatprep.subr.mxu0 0.0
      %879 = vmatpush1.msra.mxu0 0.0
      %880 = vmatprep.subr.mxu0 0.0
      %881 = vmatpush1.msra.mxu0 0.0
      %882 = vmatprep.subr.mxu0 0.0
      %883 = vmatpush1.msra.mxu0 0.0
      %884 = vmatprep.subr.mxu0 0.0
      %885 = vmatpush1.msra.mxu0 0.0
      %886 = vmatprep.subr.mxu0 0.0
      %887 = vmatpush1.msra.mxu0 0.0
      %888 = vmatprep.subr.mxu0 0.0
      %889 = vmatpush1.msra.mxu0 0.0
      %890 = vmatprep.subr.mxu0 0.0
      %891 = vmatpush1.msra.mxu0 0.0
      %892 = vmatprep.subr.mxu0 0.0
      %893 = vmatpush1.msra.mxu0 0.0
      %894 = vmatprep.subr.mxu0 0.0
      %895 = vmatpush1.msra.mxu0 0.0
      %896 = vmatprep.subr.mxu0 0.0
      %897 = vmatpush1.msra.mxu0 0.0
      %898 = vmatprep.subr.mxu0 0.0
      %899 = vmatpush1.msra.mxu0 0.0
      %900 = vmatprep.subr.mxu0 0.0
      %901 = vmatpush1.msra.mxu0 0.0
      %902 = vmatprep.subr.mxu0 0.0
      %903 = vmatpush1.msra.mxu0 0.0
      %904 = vmatprep.subr.mxu0 0.0
      %905 = vmatpush1.msra.mxu0 0.0
      %906 = vmatprep.subr.mxu0 0.0
      %907 = vmatpush1.msra.mxu0 0.0
      %908 = vmatprep.subr.mxu0 0.0
      %909 = vmatpush1.msra.mxu0 0.0
      %910 = vmatprep.subr.mxu0 0.0
      %911 = vmatpush1.msra.mxu0 0.0
      %912 = vmatprep.mubr.f32.mxu0 0.0
      %913 = vmatmul.mubr.f32.gmra.mrb[0].mxu0 %v555
      %v914 = vpop.f32.mrb[0].mxu0
      %v915 = vadd.f32 0.0, %v914
      %v916 = vpop.f32.mrb[0].mxu0
      %917 = vmatprep.mubr.f32.mxu0 0.0
      %918 = vmatmul.mubr.f32.gmra.mrb[0].mxu0 %v558
      %v919 = vpop.f32.mrb[0].mxu0
      %v920 = vadd.f32 0.0, %v919
      %v921 = vpop.f32.mrb[0].mxu0
      %922 = vmatprep.mubr.f32.mxu0 0.0
      %923 = vmatmul.mubr.f32.gmra.mrb[0].mxu0 %v561
      %v924 = vpop.f32.mrb[0].mxu0
      %v925 = vadd.f32 0.0, %v924
      %v926 = vpop.f32.mrb[0].mxu0
      %927 = vmatprep.mubr.f32.mxu0 0.0
      %928 = vmatmul.mubr.f32.gmra.mrb[0].mxu0 %v564
      %v929 = vpop.f32.mrb[0].mxu0
      %v930 = vadd.f32 0.0, %v929
      %v931 = vpop.f32.mrb[0].mxu0
      %932 = vmatprep.mubr.f32.mxu0 0.0
      %933 = vmatmul.mubr.f32.gmra.mrb[0].mxu0 %v567
      %v934 = vpop.f32.mrb[0].mxu0
      %v935 = vadd.f32 0.0, %v934
      %v936 = vpop.f32.mrb[0].mxu0
      %937 = vmatprep.mubr.f32.mxu0 0.0
      %938 = vmatmul.mubr.f32.gmra.mrb[0].mxu0 %v570
      %v939 = vpop.f32.mrb[0].mxu0
      %v940 = vadd.f32 0.0, %v939
      %v941 = vpop.f32.mrb[0].mxu0
      %942 = vmatprep.mubr.f32.mxu0 0.0
      %943 = vmatmul.mubr.f32.gmra.mrb[0].mxu0 %v573
      %v944 = vpop.f32.mrb[0].mxu0
      %v945 = vadd.f32 0.0, %v944
      %v946 = vpop.f32.mrb[0].mxu0
      %947 = vmatprep.mubr.f32.mxu0 0.0
      %948 = vmatmul.mubr.f32.gmra.mrb[0].mxu0 %v576
      %v949 = vpop.f32.mrb[0].mxu0
      %v950 = vadd.f32 0.0, %v949
      %v951 = vpop.f32.mrb[0].mxu0
      %952 = vmatprep.mubr.f32.mxu0 0.0
      %953 = vmatmul.mubr.f32.gmra.mrb[0].mxu0 %v579
      %v954 = vpop.f32.mrb[0].mxu0
      %v955 = vadd.f32 0.0, %v954
      %v956 = vpop.f32.mrb[0].mxu0
      %957 = vmatprep.mubr.f32.mxu0 0.0
      %958 = vmatmul.mubr.f32.gmra.mrb[0].mxu0 %v582
      %v959 = vpop.f32.mrb[0].mxu0
      %v960 = vadd.f32 0.0, %v959
      %v961 = vpop.f32.mrb[0].mxu0
      %962 = vmatprep.mubr.f32.mxu0 0.0
      %963 = vmatmul.mubr.f32.gmra.mrb[0].mxu0 %v585
      %v964 = vpop.f32.mrb[0].mxu0
      %v965 = vadd.f32 0.0, %v964
      %v966 = vpop.f32.mrb[0].mxu0
      %967 = vmatprep.mubr.f32.mxu0 0.0
      %968 = vmatmul.mubr.f32.gmra.mrb[0].mxu0 %v588
      %v969 = vpop.f32.mrb[0].mxu0
      %v970 = vadd.f32 0.0, %v969
      %v971 = vpop.f32.mrb[0].mxu0
      %972 = vmatprep.mubr.f32.mxu0 0.0
      %973 = vmatmul.mubr.f32.gmra.mrb[0].mxu0 %v591
      %v974 = vpop.f32.mrb[0].mxu0
      %v975 = vadd.f32 0.0, %v974
      %v976 = vpop.f32.mrb[0].mxu0
      %977 = vmatprep.mubr.f32.mxu0 0.0
      %978 = vmatmul.mubr.f32.gmra.mrb[0].mxu0 %v594
      %v979 = vpop.f32.mrb[0].mxu0
      %v980 = vadd.f32 0.0, %v979
      %v981 = vpop.f32.mrb[0].mxu0
      %982 = vmatprep.mubr.f32.mxu0 0.0
      %983 = vmatmul.mubr.f32.gmra.mrb[0].mxu0 %v597
      %v984 = vpop.f32.mrb[0].mxu0
      %v985 = vadd.f32 0.0, %v984
      %v986 = vpop.f32.mrb[0].mxu0
      %987 = vmatprep.mubr.f32.mxu0 0.0
      %988 = vmatmul.mubr.f32.gmra.mrb[0].mxu0 %v600
      %v989 = vpop.f32.mrb[0].mxu0
      %v990 = vadd.f32 0.0, %v989
      %v991 = vpop.f32.mrb[0].mxu0
      %992 = vmatprep.mubr.f32.mxu0 0.0
      %993 = vmatmul.mubr.f32.gmra.mrb[0].mxu0 %v603
      %v994 = vpop.f32.mrb[0].mxu0
      %v995 = vadd.f32 0.0, %v994
      %v996 = vpop.f32.mrb[0].mxu0
      %997 = vmatprep.mubr.f32.mxu0 0.0
      %998 = vmatmul.mubr.f32.gmra.mrb[0].mxu0 %v606
      %v999 = vpop.f32.mrb[0].mxu0
      %v1000 = vadd.f32 0.0, %v999
      %v1001 = vpop.f32.mrb[0].mxu0
      %1002 = vmatprep.mubr.f32.mxu0 0.0
      %1003 = vmatmul.mubr.f32.gmra.mrb[0].mxu0 %v609
      %v1004 = vpop.f32.mrb[0].mxu0
      %v1005 = vadd.f32 0.0, %v1004
      %v1006 = vpop.f32.mrb[0].mxu0
      %1007 = vmatprep.mubr.f32.mxu0 0.0
      %1008 = vmatmul.mubr.f32.gmra.mrb[0].mxu0 %v612
      %v1009 = vpop.f32.mrb[0].mxu0
      %v1010 = vadd.f32 0.0, %v1009
      %v1011 = vpop.f32.mrb[0].mxu0
      %1012 = vmatprep.mubr.f32.mxu0 0.0
      %1013 = vmatmul.mubr.f32.gmra.mrb[0].mxu0 %v615
      %v1014 = vpop.f32.mrb[0].mxu0
      %v1015 = vadd.f32 0.0, %v1014
      %v1016 = vpop.f32.mrb[0].mxu0
      %1017 = vmatprep.mubr.f32.mxu0 0.0
      %1018 = vmatmul.mubr.f32.gmra.mrb[0].mxu0 %v618
      %v1019 = vpop.f32.mrb[0].mxu0
      %v1020 = vadd.f32 0.0, %v1019
      %v1021 = vpop.f32.mrb[0].mxu0
      %1022 = vmatprep.mubr.f32.mxu0 0.0
      %1023 = vmatmul.mubr.f32.gmra.mrb[0].mxu0 %v621
      %v1024 = vpop.f32.mrb[0].mxu0
      %v1025 = vadd.f32 0.0, %v1024
      %v1026 = vpop.f32.mrb[0].mxu0
      %1027 = vmatprep.mubr.f32.mxu0 0.0
      %1028 = vmatmul.mubr.f32.gmra.mrb[0].mxu0 %v624
      %v1029 = vpop.f32.mrb[0].mxu0
      %v1030 = vadd.f32 0.0, %v1029
      %v1031 = vpop.f32.mrb[0].mxu0
      %1032 = vmatprep.mubr.f32.mxu0 0.0
      %1033 = vmatmul.mubr.f32.gmra.mrb[0].mxu0 %v627
      %v1034 = vpop.f32.mrb[0].mxu0
      %v1035 = vadd.f32 0.0, %v1034
      %v1036 = vpop.f32.mrb[0].mxu0
      %1037 = vmatprep.mubr.f32.mxu0 0.0
      %1038 = vmatmul.mubr.f32.gmra.mrb[0].mxu0 %v630
      %v1039 = vpop.f32.mrb[0].mxu0
      %v1040 = vadd.f32 0.0, %v1039
      %v1041 = vpop.f32.mrb[0].mxu0
      %1042 = vmatprep.mubr.f32.mxu0 0.0
      %1043 = vmatmul.mubr.f32.gmra.mrb[0].mxu0 %v633
      %v1044 = vpop.f32.mrb[0].mxu0
      %v1045 = vadd.f32 0.0, %v1044
      %v1046 = vpop.f32.mrb[0].mxu0
      %1047 = vmatprep.mubr.f32.mxu0 0.0
      %1048 = vmatmul.mubr.f32.gmra.mrb[0].mxu0 %v636
      %v1049 = vpop.f32.mrb[0].mxu0
      %v1050 = vadd.f32 0.0, %v1049
      %v1051 = vpop.f32.mrb[0].mxu0
      %1052 = vmatprep.mubr.f32.mxu0 0.0
      %1053 = vmatmul.mubr.f32.gmra.mrb[0].mxu0 %v639
      %v1054 = vpop.f32.mrb[0].mxu0
      %v1055 = vadd.f32 0.0, %v1054
      %v1056 = vpop.f32.mrb[0].mxu0
      %1057 = vmatprep.mubr.f32.mxu0 0.0
      %1058 = vmatmul.mubr.f32.gmra.mrb[0].mxu0 %v642
      %v1059 = vpop.f32.mrb[0].mxu0
      %v1060 = vadd.f32 0.0, %v1059
      %v1061 = vpop.f32.mrb[0].mxu0
      %1062 = vmatprep.mubr.f32.mxu0 0.0
      %1063 = vmatmul.mubr.f32.gmra.mrb[0].mxu0 %v645
      %v1064 = vpop.f32.mrb[0].mxu0
      %v1065 = vadd.f32 0.0, %v1064
      %v1066 = vpop.f32.mrb[0].mxu0
      %1067 = vmatprep.mubr.f32.mxu0 0.0
      %1068 = vmatmul.mubr.f32.gmra.mrb[0].mxu0 %v648
      %v1069 = vpop.f32.mrb[0].mxu0
      %v1070 = vadd.f32 0.0, %v1069
      %v1071 = vpop.f32.mrb[0].mxu0
      %1072 = vmatprep.mubr.f32.mxu0 0.0
      %1073 = vmatmul.mubr.f32.gmra.mrb[0].mxu0 %v651
      %v1074 = vpop.f32.mrb[0].mxu0
      %v1075 = vadd.f32 0.0, %v1074
      %v1076 = vpop.f32.mrb[0].mxu0
      %1077 = vmatprep.mubr.f32.mxu0 0.0
      %1078 = vmatmul.mubr.f32.gmra.mrb[0].mxu0 %v654
      %v1079 = vpop.f32.mrb[0].mxu0
      %v1080 = vadd.f32 0.0, %v1079
      %v1081 = vpop.f32.mrb[0].mxu0
      %1082 = vmatprep.mubr.f32.mxu0 0.0
      %1083 = vmatmul.mubr.f32.gmra.mrb[0].mxu0 %v657
      %v1084 = vpop.f32.mrb[0].mxu0
      %v1085 = vadd.f32 0.0, %v1084
      %v1086 = vpop.f32.mrb[0].mxu0
      %1087 = vmatprep.mubr.f32.mxu0 0.0
      %1088 = vmatmul.mubr.f32.gmra.mrb[0].mxu0 %v660
      %v1089 = vpop.f32.mrb[0].mxu0
      %v1090 = vadd.f32 0.0, %v1089
      %v1091 = vpop.f32.mrb[0].mxu0
      %1092 = vmatprep.mubr.f32.mxu0 0.0
      %1093 = vmatmul.mubr.f32.gmra.mrb[0].mxu0 %v663
      %v1094 = vpop.f32.mrb[0].mxu0
      %v1095 = vadd.f32 0.0, %v1094
      %v1096 = vpop.f32.mrb[0].mxu0
      %1097 = vmatprep.mubr.f32.mxu0 0.0
      %1098 = vmatmul.mubr.f32.gmra.mrb[0].mxu0 %v666
      %v1099 = vpop.f32.mrb[0].mxu0
      %v1100 = vadd.f32 0.0, %v1099
      %v1101 = vpop.f32.mrb[0].mxu0
      %1102 = vmatprep.mubr.f32.mxu0 0.0
      %1103 = vmatmul.mubr.f32.gmra.mrb[0].mxu0 %v669
      %v1104 = vpop.f32.mrb[0].mxu0
      %v1105 = vadd.f32 0.0, %v1104
      %v1106 = vpop.f32.mrb[0].mxu0
      %1107 = vmatprep.mubr.f32.mxu0 0.0
      %1108 = vmatmul.mubr.f32.gmra.mrb[0].mxu0 %v672
      %v1109 = vpop.f32.mrb[0].mxu0
      %v1110 = vadd.f32 0.0, %v1109
      %v1111 = vpop.f32.mrb[0].mxu0
      %1112 = vmatprep.mubr.f32.mxu0 0.0
      %1113 = vmatmul.mubr.f32.gmra.mrb[0].mxu0 %v675
      %v1114 = vpop.f32.mrb[0].mxu0
      %v1115 = vadd.f32 0.0, %v1114
      %v1116 = vpop.f32.mrb[0].mxu0
      %1117 = vmatprep.mubr.f32.mxu0 0.0
      %1118 = vmatmul.mubr.f32.gmra.mrb[0].mxu0 %v678
      %v1119 = vpop.f32.mrb[0].mxu0
      %v1120 = vadd.f32 0.0, %v1119
      %v1121 = vpop.f32.mrb[0].mxu0
      %1122 = vmatprep.mubr.f32.mxu0 0.0
      %1123 = vmatmul.mubr.f32.gmra.mrb[0].mxu0 %v681
      %v1124 = vpop.f32.mrb[0].mxu0
      %v1125 = vadd.f32 0.0, %v1124
      %v1126 = vpop.f32.mrb[0].mxu0
      %1127 = vmatprep.mubr.f32.mxu0 0.0
      %1128 = vmatmul.mubr.f32.gmra.mrb[0].mxu0 %v684
      %v1129 = vpop.f32.mrb[0].mxu0
      %v1130 = vadd.f32 0.0, %v1129
      %v1131 = vpop.f32.mrb[0].mxu0
      %1132 = vmatprep.mubr.f32.mxu0 0.0
      %1133 = vmatmul.mubr.f32.gmra.mrb[0].mxu0 %v687
      %v1134 = vpop.f32.mrb[0].mxu0
      %v1135 = vadd.f32 0.0, %v1134
      %v1136 = vpop.f32.mrb[0].mxu0
      %1137 = vmatprep.mubr.f32.mxu0 0.0
      %1138 = vmatmul.mubr.f32.gmra.mrb[0].mxu0 %v690
      %v1139 = vpop.f32.mrb[0].mxu0
      %v1140 = vadd.f32 0.0, %v1139
      %v1141 = vpop.f32.mrb[0].mxu0
      %1142 = vmatprep.mubr.f32.mxu0 0.0
      %1143 = vmatmul.mubr.f32.gmra.mrb[0].mxu0 %v693
      %v1144 = vpop.f32.mrb[0].mxu0
      %v1145 = vadd.f32 0.0, %v1144
      %v1146 = vpop.f32.mrb[0].mxu0
      %1147 = vmatprep.mubr.f32.mxu0 0.0
      %1148 = vmatmul.mubr.f32.gmra.mrb[0].mxu0 %v696
      %v1149 = vpop.f32.mrb[0].mxu0
      %v1150 = vadd.f32 0.0, %v1149
      %v1151 = vpop.f32.mrb[0].mxu0
      %1152 = vmatprep.mubr.f32.mxu0 0.0
      %1153 = vmatmul.mubr.f32.gmra.mrb[0].mxu0 %v699
      %v1154 = vpop.f32.mrb[0].mxu0
      %v1155 = vadd.f32 0.0, %v1154
      %v1156 = vpop.f32.mrb[0].mxu0
      %1157 = vmatprep.mubr.f32.mxu0 0.0
      %1158 = vmatmul.mubr.f32.gmra.mrb[0].mxu0 %v702
      %v1159 = vpop.f32.mrb[0].mxu0
      %v1160 = vadd.f32 0.0, %v1159
      %v1161 = vpop.f32.mrb[0].mxu0
      %1162 = vmatprep.mubr.f32.mxu0 0.0
      %1163 = vmatmul.mubr.f32.gmra.mrb[0].mxu0 %v705
      %v1164 = vpop.f32.mrb[0].mxu0
      %v1165 = vadd.f32 0.0, %v1164
      %v1166 = vpop.f32.mrb[0].mxu0
      %1167 = vmatprep.mubr.f32.mxu0 0.0
      %1168 = vmatmul.mubr.f32.gmra.mrb[0].mxu0 %v708
      %v1169 = vpop.f32.mrb[0].mxu0
      %v1170 = vadd.f32 0.0, %v1169
      %v1171 = vpop.f32.mrb[0].mxu0
      %1172 = vmatprep.mubr.f32.mxu0 0.0
      %1173 = vmatmul.mubr.f32.gmra.mrb[0].mxu0 %v711
      %v1174 = vpop.f32.mrb[0].mxu0
      %v1175 = vadd.f32 0.0, %v1174
      %v1176 = vpop.f32.mrb[0].mxu0
      %1177 = vmatprep.mubr.f32.mxu0 0.0
      %1178 = vmatmul.mubr.f32.gmra.mrb[0].mxu0 %v714
      %v1179 = vpop.f32.mrb[0].mxu0
      %v1180 = vadd.f32 0.0, %v1179
      %v1181 = vpop.f32.mrb[0].mxu0
      %1182 = vmatprep.mubr.f32.mxu0 0.0
      %1183 = vmatmul.mubr.f32.gmra.mrb[0].mxu0 %v717
      %v1184 = vpop.f32.mrb[0].mxu0
      %v1185 = vadd.f32 0.0, %v1184
      %v1186 = vpop.f32.mrb[0].mxu0
      %1187 = vmatprep.mubr.f32.mxu0 0.0
      %1188 = vmatmul.mubr.f32.gmra.mrb[0].mxu0 %v720
      %v1189 = vpop.f32.mrb[0].mxu0
      %v1190 = vadd.f32 0.0, %v1189
      %v1191 = vpop.f32.mrb[0].mxu0
      %1192 = vmatprep.mubr.f32.mxu0 0.0
      %1193 = vmatmul.mubr.f32.gmra.mrb[0].mxu0 %v723
      %v1194 = vpop.f32.mrb[0].mxu0
      %v1195 = vadd.f32 0.0, %v1194
      %v1196 = vpop.f32.mrb[0].mxu0
      %1197 = vmatprep.mubr.f32.mxu0 0.0
      %1198 = vmatmul.mubr.f32.gmra.mrb[0].mxu0 %v726
      %v1199 = vpop.f32.mrb[0].mxu0
      %v1200 = vadd.f32 0.0, %v1199
      %v1201 = vpop.f32.mrb[0].mxu0
      %1202 = vmatprep.mubr.f32.mxu0 0.0
      %1203 = vmatmul.mubr.f32.gmra.mrb[0].mxu0 %v729
      %v1204 = vpop.f32.mrb[0].mxu0
      %v1205 = vadd.f32 0.0, %v1204
      %v1206 = vpop.f32.mrb[0].mxu0
      %1207 = vmatprep.mubr.f32.mxu0 0.0
      %1208 = vmatmul.mubr.f32.gmra.mrb[0].mxu0 %v732
      %v1209 = vpop.f32.mrb[0].mxu0
      %v1210 = vadd.f32 0.0, %v1209
      %v1211 = vpop.f32.mrb[0].mxu0
      %1212 = vmatprep.mubr.f32.mxu0 0.0
      %1213 = vmatmul.mubr.f32.gmra.mrb[0].mxu0 %v735
      %v1214 = vpop.f32.mrb[0].mxu0
      %v1215 = vadd.f32 0.0, %v1214
      %v1216 = vpop.f32.mrb[0].mxu0
      %1217 = vmatprep.mubr.f32.mxu0 0.0
      %1218 = vmatmul.mubr.f32.gmra.mrb[0].mxu0 %v738
      %v1219 = vpop.f32.mrb[0].mxu0
      %v1220 = vadd.f32 0.0, %v1219
      %v1221 = vpop.f32.mrb[0].mxu0
      %1222 = vmatprep.mubr.f32.mxu0 0.0
      %1223 = vmatmul.mubr.f32.gmra.mrb[0].mxu0 %v741
      %v1224 = vpop.f32.mrb[0].mxu0
      %v1225 = vadd.f32 0.0, %v1224
      %v1226 = vpop.f32.mrb[0].mxu0
      %1227 = vmatprep.mubr.f32.mxu0 0.0
      %1228 = vmatmul.mubr.f32.gmra.mrb[0].mxu0 %v744
      %v1229 = vpop.f32.mrb[0].mxu0
      %v1230 = vadd.f32 0.0, %v1229
      %v1231 = vpop.f32.mrb[0].mxu0
      %1232 = vmatprep.mubr.f32.mxu0 0.0
      %1233 = vmatmul.mubr.f32.gmra.mrb[0].mxu0 %v747
      %v1234 = vpop.f32.mrb[0].mxu0
      %v1235 = vadd.f32 0.0, %v1234
      %v1236 = vpop.f32.mrb[0].mxu0
      %1237 = vmatprep.mubr.f32.mxu0 0.0
      %1238 = vmatmul.mubr.f32.gmra.mrb[0].mxu0 %v750
      %v1239 = vpop.f32.mrb[0].mxu0
      %v1240 = vadd.f32 0.0, %v1239
      %v1241 = vpop.f32.mrb[0].mxu0
      %1242 = vmatprep.mubr.f32.mxu0 0.0
      %1243 = vmatmul.mubr.f32.gmra.mrb[0].mxu0 %v753
      %v1244 = vpop.f32.mrb[0].mxu0
      %v1245 = vadd.f32 0.0, %v1244
      %v1246 = vpop.f32.mrb[0].mxu0
      %1247 = vmatprep.mubr.f32.mxu0 0.0
      %1248 = vmatmul.mubr.f32.gmra.mrb[0].mxu0 %v756
      %v1249 = vpop.f32.mrb[0].mxu0
      %v1250 = vadd.f32 0.0, %v1249
      %v1251 = vpop.f32.mrb[0].mxu0
      %1252 = vmatprep.mubr.f32.mxu0 0.0
      %1253 = vmatmul.mubr.f32.gmra.mrb[0].mxu0 %v759
      %v1254 = vpop.f32.mrb[0].mxu0
      %v1255 = vadd.f32 0.0, %v1254
      %v1256 = vpop.f32.mrb[0].mxu0
      %1257 = vmatprep.mubr.f32.mxu0 0.0
      %1258 = vmatmul.mubr.f32.gmra.mrb[0].mxu0 %v762
      %v1259 = vpop.f32.mrb[0].mxu0
      %v1260 = vadd.f32 0.0, %v1259
      %v1261 = vpop.f32.mrb[0].mxu0
      %1262 = vmatprep.mubr.f32.mxu0 0.0
      %1263 = vmatmul.mubr.f32.gmra.mrb[0].mxu0 %v765
      %v1264 = vpop.f32.mrb[0].mxu0
      %v1265 = vadd.f32 0.0, %v1264
      %v1266 = vpop.f32.mrb[0].mxu0
      %1267 = vmatprep.mubr.f32.mxu0 0.0
      %1268 = vmatmul.mubr.f32.gmra.mrb[0].mxu0 %v768
      %v1269 = vpop.f32.mrb[0].mxu0
      %v1270 = vadd.f32 0.0, %v1269
      %v1271 = vpop.f32.mrb[0].mxu0
      %1272 = vmatprep.mubr.f32.mxu0 0.0
      %1273 = vmatmul.mubr.f32.gmra.mrb[0].mxu0 %v771
      %v1274 = vpop.f32.mrb[0].mxu0
      %v1275 = vadd.f32 0.0, %v1274
      %v1276 = vpop.f32.mrb[0].mxu0
      %1277 = vmatprep.mubr.f32.mxu0 0.0
      %1278 = vmatmul.mubr.f32.gmra.mrb[0].mxu0 %v774
      %v1279 = vpop.f32.mrb[0].mxu0
      %v1280 = vadd.f32 0.0, %v1279
      %v1281 = vpop.f32.mrb[0].mxu0
      %1282 = vmatprep.mubr.f32.mxu0 0.0
      %1283 = vmatmul.mubr.f32.gmra.mrb[0].mxu0 %v777
      %v1284 = vpop.f32.mrb[0].mxu0
      %v1285 = vadd.f32 0.0, %v1284
      %v1286 = vpop.f32.mrb[0].mxu0
      %1287 = vmatprep.mubr.f32.mxu0 0.0
      %1288 = vmatmul.mubr.f32.gmra.mrb[0].mxu0 %v780
      %v1289 = vpop.f32.mrb[0].mxu0
      %v1290 = vadd.f32 0.0, %v1289
      %v1291 = vpop.f32.mrb[0].mxu0
      %1292 = vmatprep.mubr.f32.mxu0 0.0
      %1293 = vmatmul.mubr.f32.gmra.mrb[0].mxu0 %v783
      %v1294 = vpop.f32.mrb[0].mxu0
      %v1295 = vadd.f32 0.0, %v1294
      %v1296 = vpop.f32.mrb[0].mxu0
      %1297 = vmatprep.mubr.f32.mxu0 0.0
      %1298 = vmatmul.mubr.f32.gmra.mrb[0].mxu0 %v786
      %v1299 = vpop.f32.mrb[0].mxu0
      %v1300 = vadd.f32 0.0, %v1299
      %v1301 = vpop.f32.mrb[0].mxu0
      %1302 = vmatprep.mubr.f32.mxu0 0.0
      %1303 = vmatmul.mubr.f32.gmra.mrb[0].mxu0 %v789
      %v1304 = vpop.f32.mrb[0].mxu0
      %v1305 = vadd.f32 0.0, %v1304
      %v1306 = vpop.f32.mrb[0].mxu0
      %1307 = vmatprep.mubr.f32.mxu0 0.0
      %1308 = vmatmul.mubr.f32.gmra.mrb[0].mxu0 %v792
      %v1309 = vpop.f32.mrb[0].mxu0
      %v1310 = vadd.f32 0.0, %v1309
      %v1311 = vpop.f32.mrb[0].mxu0
      %1312 = vmatprep.mubr.f32.mxu0 0.0
      %1313 = vmatmul.mubr.f32.gmra.mrb[0].mxu0 %v795
      %v1314 = vpop.f32.mrb[0].mxu0
      %v1315 = vadd.f32 0.0, %v1314
      %v1316 = vpop.f32.mrb[0].mxu0
      %1317 = vmatprep.mubr.f32.mxu0 0.0
      %1318 = vmatmul.mubr.f32.gmra.mrb[0].mxu0 %v798
      %v1319 = vpop.f32.mrb[0].mxu0
      %v1320 = vadd.f32 0.0, %v1319
      %v1321 = vpop.f32.mrb[0].mxu0
      %1322 = vmatprep.mubr.f32.mxu0 0.0
      %1323 = vmatmul.mubr.f32.gmra.mrb[0].mxu0 %v801
      %v1324 = vpop.f32.mrb[0].mxu0
      %v1325 = vadd.f32 0.0, %v1324
      %v1326 = vpop.f32.mrb[0].mxu0
      %1327 = vmatprep.mubr.f32.mxu0 0.0
      %1328 = vmatmul.mubr.f32.gmra.mrb[0].mxu0 %v804
      %v1329 = vpop.f32.mrb[0].mxu0
      %v1330 = vadd.f32 0.0, %v1329
      %v1331 = vpop.f32.mrb[0].mxu0
      %1332 = vmatprep.mubr.f32.mxu0 0.0
      %1333 = vmatmul.mubr.f32.gmra.mrb[0].mxu0 %v807
      %v1334 = vpop.f32.mrb[0].mxu0
      %v1335 = vadd.f32 0.0, %v1334
      %v1336 = vpop.f32.mrb[0].mxu0
      %1337 = vmatprep.mubr.f32.mxu0 0.0
      %1338 = vmatmul.mubr.f32.gmra.mrb[0].mxu0 %v810
      %v1339 = vpop.f32.mrb[0].mxu0
      %v1340 = vadd.f32 0.0, %v1339
      %v1341 = vpop.f32.mrb[0].mxu0
      %1342 = vmatprep.mubr.f32.mxu0 0.0
      %1343 = vmatmul.mubr.f32.gmra.mrb[0].mxu0 %v813
      %v1344 = vpop.f32.mrb[0].mxu0
      %v1345 = vadd.f32 0.0, %v1344
      %v1346 = vpop.f32.mrb[0].mxu0
      %1347 = vmatprep.mubr.f32.mxu0 0.0
      %1348 = vmatmul.mubr.f32.gmra.mrb[0].mxu0 %v816
      %v1349 = vpop.f32.mrb[0].mxu0
      %v1350 = vadd.f32 0.0, %v1349
      %v1351 = vpop.f32.mrb[0].mxu0
      %1352 = vmatprep.mubr.f32.mxu0 0.0
      %1353 = vmatmul.mubr.f32.gmra.mrb[0].mxu0 %v819
      %v1354 = vpop.f32.mrb[0].mxu0
      %v1355 = vadd.f32 0.0, %v1354
      %v1356 = vpop.f32.mrb[0].mxu0
      %1357 = vmatprep.mubr.f32.mxu0 0.0
      %1358 = vmatmul.mubr.f32.gmra.mrb[0].mxu0 %v822
      %v1359 = vpop.f32.mrb[0].mxu0
      %v1360 = vadd.f32 0.0, %v1359
      %v1361 = vpop.f32.mrb[0].mxu0
      %1362 = vmatprep.mubr.f32.mxu0 0.0
      %1363 = vmatmul.mubr.f32.gmra.mrb[0].mxu0 %v825
      %v1364 = vpop.f32.mrb[0].mxu0
      %v1365 = vadd.f32 0.0, %v1364
      %v1366 = vpop.f32.mrb[0].mxu0
      %1367 = vmatprep.mubr.f32.mxu0 0.0
      %1368 = vmatmul.mubr.f32.gmra.mrb[0].mxu0 %v828
      %v1369 = vpop.f32.mrb[0].mxu0
      %v1370 = vadd.f32 0.0, %v1369
      %v1371 = vpop.f32.mrb[0].mxu0
      %1372 = vmatprep.mubr.f32.mxu0 0.0
      %1373 = vmatmul.mubr.f32.gmra.mrb[0].mxu0 %v831
      %v1374 = vpop.f32.mrb[0].mxu0
      %v1375 = vadd.f32 0.0, %v1374
      %v1376 = vpop.f32.mrb[0].mxu0
      %1377 = vmatprep.mubr.f32.mxu0 0.0
      %1378 = vmatmul.mubr.f32.gmra.mrb[0].mxu0 %v834
      %v1379 = vpop.f32.mrb[0].mxu0
      %v1380 = vadd.f32 0.0, %v1379
      %v1381 = vpop.f32.mrb[0].mxu0
      %1382 = vmatprep.mubr.f32.mxu0 0.0
      %1383 = vmatmul.mubr.f32.gmra.mrb[0].mxu0 %v837
      %v1384 = vpop.f32.mrb[0].mxu0
      %v1385 = vadd.f32 0.0, %v1384
      %v1386 = vpop.f32.mrb[0].mxu0
      %1387 = vmatprep.mubr.f32.mxu0 0.0
      %1388 = vmatmul.mubr.f32.gmra.mrb[0].mxu0 %v840
      %v1389 = vpop.f32.mrb[0].mxu0
      %v1390 = vadd.f32 0.0, %v1389
      %v1391 = vpop.f32.mrb[0].mxu0
      %1392 = vmatprep.mubr.f32.mxu0 0.0
      %1393 = vmatmul.mubr.f32.gmra.mrb[0].mxu0 %v843
      %v1394 = vpop.f32.mrb[0].mxu0
      %v1395 = vadd.f32 0.0, %v1394
      %v1396 = vpop.f32.mrb[0].mxu0
      %1397 = vmatprep.mubr.f32.mxu0 0.0
      %1398 = vmatmul.mubr.f32.gmra.mrb[0].mxu0 %v846
      %v1399 = vpop.f32.mrb[0].mxu0
      %v1400 = vadd.f32 0.0, %v1399
      %v1401 = vpop.f32.mrb[0].mxu0
      %1402 = vdwg.mxu0
      %v1403 = vmul.f32 %v915, %v357
      %v1404 = vmul.f32 %v920, %v358
      %v1405 = vmul.f32 %v925, %v359
      %v1406 = vmul.f32 %v930, %v360
      %v1407 = vmul.f32 %v935, %v361
      %v1408 = vmul.f32 %v940, %v362
      %v1409 = vmul.f32 %v945, %v363
      %v1410 = vmul.f32 %v950, %v364
      %v1411 = vmul.f32 %v955, %v365
      %v1412 = vmul.f32 %v960, %v366
      %v1413 = vmul.f32 %v965, %v367
      %v1414 = vmul.f32 %v970, %v368
      %v1415 = vmul.f32 %v975, %v369
      %v1416 = vmul.f32 %v980, %v370
      %v1417 = vmul.f32 %v985, %v371
      %v1418 = vmul.f32 %v990, %v372
      %v1419 = vmul.f32 %v995, %v373
      %v1420 = vmul.f32 %v1000, %v374
      %v1421 = vmul.f32 %v1005, %v375
      %v1422 = vmul.f32 %v1010, %v376
      %v1423 = vmul.f32 %v1015, %v377
      %v1424 = vmul.f32 %v1020, %v378
      %v1425 = vmul.f32 %v1025, %v379
      %v1426 = vmul.f32 %v1030, %v380
      %v1427 = vmul.f32 %v1035, %v381
      %v1428 = vmul.f32 %v1040, %v382
      %v1429 = vmul.f32 %v1045, %v383
      %v1430 = vmul.f32 %v1050, %v384
      %v1431 = vmul.f32 %v1055, %v385
      %v1432 = vmul.f32 %v1060, %v386
      %v1433 = vmul.f32 %v1065, %v387
      %v1434 = vmul.f32 %v1070, %v388
      %v1435 = vmul.f32 %v1075, %v389
      %v1436 = vmul.f32 %v1080, %v390
      %v1437 = vmul.f32 %v1085, %v391
      %v1438 = vmul.f32 %v1090, %v392
      %v1439 = vmul.f32 %v1095, %v393
      %v1440 = vmul.f32 %v1100, %v394
      %v1441 = vmul.f32 %v1105, %v395
      %v1442 = vmul.f32 %v1110, %v396
      %v1443 = vmul.f32 %v1115, %v397
      %v1444 = vmul.f32 %v1120, %v398
      %v1445 = vmul.f32 %v1125, %v399
      %v1446 = vmul.f32 %v1130, %v400
      %v1447 = vmul.f32 %v1135, %v401
      %v1448 = vmul.f32 %v1140, %v402
      %v1449 = vmul.f32 %v1145, %v403
      %v1450 = vmul.f32 %v1150, %v404
      %v1451 = vmul.f32 %v1155, %v405
      %v1452 = vmul.f32 %v1160, %v406
      %v1453 = vmul.f32 %v1165, %v407
      %v1454 = vmul.f32 %v1170, %v408
      %v1455 = vmul.f32 %v1175, %v409
      %v1456 = vmul.f32 %v1180, %v410
      %v1457 = vmul.f32 %v1185, %v411
      %v1458 = vmul.f32 %v1190, %v412
      %v1459 = vmul.f32 %v1195, %v413
      %v1460 = vmul.f32 %v1200, %v414
      %v1461 = vmul.f32 %v1205, %v415
      %v1462 = vmul.f32 %v1210, %v416
      %v1463 = vmul.f32 %v1215, %v417
      %v1464 = vmul.f32 %v1220, %v418
      %v1465 = vmul.f32 %v1225, %v419
      %v1466 = vmul.f32 %v1230, %v420
      %v1467 = vmul.f32 %v1235, %v421
      %v1468 = vmul.f32 %v1240, %v422
      %v1469 = vmul.f32 %v1245, %v423
      %v1470 = vmul.f32 %v1250, %v424
      %v1471 = vmul.f32 %v1255, %v425
      %v1472 = vmul.f32 %v1260, %v426
      %v1473 = vmul.f32 %v1265, %v427
      %v1474 = vmul.f32 %v1270, %v428
      %v1475 = vmul.f32 %v1275, %v429
      %v1476 = vmul.f32 %v1280, %v430
      %v1477 = vmul.f32 %v1285, %v431
      %v1478 = vmul.f32 %v1290, %v432
      %v1479 = vmul.f32 %v1295, %v433
      %v1480 = vmul.f32 %v1300, %v434
      %v1481 = vmul.f32 %v1305, %v435
      %v1482 = vmul.f32 %v1310, %v436
      %v1483 = vmul.f32 %v1315, %v437
      %v1484 = vmul.f32 %v1320, %v438
      %v1485 = vmul.f32 %v1325, %v439
      %v1486 = vmul.f32 %v1330, %v440
      %v1487 = vmul.f32 %v1335, %v441
      %v1488 = vmul.f32 %v1340, %v442
      %v1489 = vmul.f32 %v1345, %v443
      %v1490 = vmul.f32 %v1350, %v444
      %v1491 = vmul.f32 %v1355, %v445
      %v1492 = vmul.f32 %v1360, %v446
      %v1493 = vmul.f32 %v1365, %v447
      %v1494 = vmul.f32 %v1370, %v448
      %v1495 = vmul.f32 %v1375, %v449
      %v1496 = vmul.f32 %v1380, %v450
      %v1497 = vmul.f32 %v1385, %v451
      %v1498 = vmul.f32 %v1390, %v452
      %v1499 = vmul.f32 %v1395, %v453
      %v1500 = vmul.f32 %v1400, %v454
      %vm1501 = vcmask 400384
      %v1502 = vsel %vm1501, %v1403, 0.0
      %1503 = vadd.xlane.f32.xlu0 %v1502
      %v1504 = vpop.xlane.xlu0 %1503
      %v1505 = vsel %vm1501, %v1404, 0.0
      %1506 = vadd.xlane.f32.xlu0 %v1505
      %v1507 = vpop.xlane.xlu0 %1506
      %v1508 = vsel %vm1501, %v1405, 0.0
      %1509 = vadd.xlane.f32.xlu0 %v1508
      %v1510 = vpop.xlane.xlu0 %1509
      %v1511 = vsel %vm1501, %v1406, 0.0
      %1512 = vadd.xlane.f32.xlu0 %v1511
      %v1513 = vpop.xlane.xlu0 %1512
      %v1514 = vsel %vm1501, %v1407, 0.0
      %1515 = vadd.xlane.f32.xlu0 %v1514
      %v1516 = vpop.xlane.xlu0 %1515
      %v1517 = vsel %vm1501, %v1408, 0.0
      %1518 = vadd.xlane.f32.xlu0 %v1517
      %v1519 = vpop.xlane.xlu0 %1518
      %v1520 = vsel %vm1501, %v1409, 0.0
      %1521 = vadd.xlane.f32.xlu0 %v1520
      %v1522 = vpop.xlane.xlu0 %1521
      %v1523 = vsel %vm1501, %v1410, 0.0
      %1524 = vadd.xlane.f32.xlu0 %v1523
      %v1525 = vpop.xlane.xlu0 %1524
      %v1526 = vsel %vm1501, %v1411, 0.0
      %1527 = vadd.xlane.f32.xlu0 %v1526
      %v1528 = vpop.xlane.xlu0 %1527
      %v1529 = vsel %vm1501, %v1412, 0.0
      %1530 = vadd.xlane.f32.xlu0 %v1529
      %v1531 = vpop.xlane.xlu0 %1530
      %v1532 = vsel %vm1501, %v1413, 0.0
      %1533 = vadd.xlane.f32.xlu0 %v1532
      %v1534 = vpop.xlane.xlu0 %1533
      %v1535 = vsel %vm1501, %v1414, 0.0
      %1536 = vadd.xlane.f32.xlu0 %v1535
      %v1537 = vpop.xlane.xlu0 %1536
      %v1538 = vsel %vm1501, %v1415, 0.0
      %1539 = vadd.xlane.f32.xlu0 %v1538
      %v1540 = vpop.xlane.xlu0 %1539
      %v1541 = vsel %vm1501, %v1416, 0.0
      %1542 = vadd.xlane.f32.xlu0 %v1541
      %v1543 = vpop.xlane.xlu0 %1542
      %v1544 = vsel %vm1501, %v1417, 0.0
      %1545 = vadd.xlane.f32.xlu0 %v1544
      %v1546 = vpop.xlane.xlu0 %1545
      %v1547 = vsel %vm1501, %v1418, 0.0
      %1548 = vadd.xlane.f32.xlu0 %v1547
      %v1549 = vpop.xlane.xlu0 %1548
      %v1550 = vsel %vm1501, %v1419, 0.0
      %1551 = vadd.xlane.f32.xlu0 %v1550
      %v1552 = vpop.xlane.xlu0 %1551
      %v1553 = vsel %vm1501, %v1420, 0.0
      %1554 = vadd.xlane.f32.xlu0 %v1553
      %v1555 = vpop.xlane.xlu0 %1554
      %v1556 = vsel %vm1501, %v1421, 0.0
      %1557 = vadd.xlane.f32.xlu0 %v1556
      %v1558 = vpop.xlane.xlu0 %1557
      %v1559 = vsel %vm1501, %v1422, 0.0
      %1560 = vadd.xlane.f32.xlu0 %v1559
      %v1561 = vpop.xlane.xlu0 %1560
      %v1562 = vsel %vm1501, %v1423, 0.0
      %1563 = vadd.xlane.f32.xlu0 %v1562
      %v1564 = vpop.xlane.xlu0 %1563
      %v1565 = vsel %vm1501, %v1424, 0.0
      %1566 = vadd.xlane.f32.xlu0 %v1565
      %v1567 = vpop.xlane.xlu0 %1566
      %v1568 = vsel %vm1501, %v1425, 0.0
      %1569 = vadd.xlane.f32.xlu0 %v1568
      %v1570 = vpop.xlane.xlu0 %1569
      %v1571 = vsel %vm1501, %v1426, 0.0
      %1572 = vadd.xlane.f32.xlu0 %v1571
      %v1573 = vpop.xlane.xlu0 %1572
      %v1574 = vsel %vm1501, %v1427, 0.0
      %1575 = vadd.xlane.f32.xlu0 %v1574
      %v1576 = vpop.xlane.xlu0 %1575
      %v1577 = vsel %vm1501, %v1428, 0.0
      %1578 = vadd.xlane.f32.xlu0 %v1577
      %v1579 = vpop.xlane.xlu0 %1578
      %v1580 = vsel %vm1501, %v1429, 0.0
      %1581 = vadd.xlane.f32.xlu0 %v1580
      %v1582 = vpop.xlane.xlu0 %1581
      %v1583 = vsel %vm1501, %v1430, 0.0
      %1584 = vadd.xlane.f32.xlu0 %v1583
      %v1585 = vpop.xlane.xlu0 %1584
      %v1586 = vsel %vm1501, %v1431, 0.0
      %1587 = vadd.xlane.f32.xlu0 %v1586
      %v1588 = vpop.xlane.xlu0 %1587
      %v1589 = vsel %vm1501, %v1432, 0.0
      %1590 = vadd.xlane.f32.xlu0 %v1589
      %v1591 = vpop.xlane.xlu0 %1590
      %v1592 = vsel %vm1501, %v1433, 0.0
      %1593 = vadd.xlane.f32.xlu0 %v1592
      %v1594 = vpop.xlane.xlu0 %1593
      %v1595 = vsel %vm1501, %v1434, 0.0
      %1596 = vadd.xlane.f32.xlu0 %v1595
      %v1597 = vpop.xlane.xlu0 %1596
      %v1598 = vsel %vm1501, %v1435, 0.0
      %1599 = vadd.xlane.f32.xlu0 %v1598
      %v1600 = vpop.xlane.xlu0 %1599
      %v1601 = vsel %vm1501, %v1436, 0.0
      %1602 = vadd.xlane.f32.xlu0 %v1601
      %v1603 = vpop.xlane.xlu0 %1602
      %v1604 = vsel %vm1501, %v1437, 0.0
      %1605 = vadd.xlane.f32.xlu0 %v1604
      %v1606 = vpop.xlane.xlu0 %1605
      %v1607 = vsel %vm1501, %v1438, 0.0
      %1608 = vadd.xlane.f32.xlu0 %v1607
      %v1609 = vpop.xlane.xlu0 %1608
      %v1610 = vsel %vm1501, %v1439, 0.0
      %1611 = vadd.xlane.f32.xlu0 %v1610
      %v1612 = vpop.xlane.xlu0 %1611
      %v1613 = vsel %vm1501, %v1440, 0.0
      %1614 = vadd.xlane.f32.xlu0 %v1613
      %v1615 = vpop.xlane.xlu0 %1614
      %v1616 = vsel %vm1501, %v1441, 0.0
      %1617 = vadd.xlane.f32.xlu0 %v1616
      %v1618 = vpop.xlane.xlu0 %1617
      %v1619 = vsel %vm1501, %v1442, 0.0
      %1620 = vadd.xlane.f32.xlu0 %v1619
      %v1621 = vpop.xlane.xlu0 %1620
      %v1622 = vsel %vm1501, %v1443, 0.0
      %1623 = vadd.xlane.f32.xlu0 %v1622
      %v1624 = vpop.xlane.xlu0 %1623
      %v1625 = vsel %vm1501, %v1444, 0.0
      %1626 = vadd.xlane.f32.xlu0 %v1625
      %v1627 = vpop.xlane.xlu0 %1626
      %v1628 = vsel %vm1501, %v1445, 0.0
      %1629 = vadd.xlane.f32.xlu0 %v1628
      %v1630 = vpop.xlane.xlu0 %1629
      %v1631 = vsel %vm1501, %v1446, 0.0
      %1632 = vadd.xlane.f32.xlu0 %v1631
      %v1633 = vpop.xlane.xlu0 %1632
      %v1634 = vsel %vm1501, %v1447, 0.0
      %1635 = vadd.xlane.f32.xlu0 %v1634
      %v1636 = vpop.xlane.xlu0 %1635
      %v1637 = vsel %vm1501, %v1448, 0.0
      %1638 = vadd.xlane.f32.xlu0 %v1637
      %v1639 = vpop.xlane.xlu0 %1638
      %v1640 = vsel %vm1501, %v1449, 0.0
      %1641 = vadd.xlane.f32.xlu0 %v1640
      %v1642 = vpop.xlane.xlu0 %1641
      %v1643 = vsel %vm1501, %v1450, 0.0
      %1644 = vadd.xlane.f32.xlu0 %v1643
      %v1645 = vpop.xlane.xlu0 %1644
      %v1646 = vsel %vm1501, %v1451, 0.0
      %1647 = vadd.xlane.f32.xlu0 %v1646
      %v1648 = vpop.xlane.xlu0 %1647
      %v1649 = vsel %vm1501, %v1452, 0.0
      %1650 = vadd.xlane.f32.xlu0 %v1649
      %v1651 = vpop.xlane.xlu0 %1650
      %v1652 = vsel %vm1501, %v1453, 0.0
      %1653 = vadd.xlane.f32.xlu0 %v1652
      %v1654 = vpop.xlane.xlu0 %1653
      %v1655 = vsel %vm1501, %v1454, 0.0
      %1656 = vadd.xlane.f32.xlu0 %v1655
      %v1657 = vpop.xlane.xlu0 %1656
      %v1658 = vsel %vm1501, %v1455, 0.0
      %1659 = vadd.xlane.f32.xlu0 %v1658
      %v1660 = vpop.xlane.xlu0 %1659
      %v1661 = vsel %vm1501, %v1456, 0.0
      %1662 = vadd.xlane.f32.xlu0 %v1661
      %v1663 = vpop.xlane.xlu0 %1662
      %v1664 = vsel %vm1501, %v1457, 0.0
      %1665 = vadd.xlane.f32.xlu0 %v1664
      %v1666 = vpop.xlane.xlu0 %1665
      %v1667 = vsel %vm1501, %v1458, 0.0
      %1668 = vadd.xlane.f32.xlu0 %v1667
      %v1669 = vpop.xlane.xlu0 %1668
      %v1670 = vsel %vm1501, %v1459, 0.0
      %1671 = vadd.xlane.f32.xlu0 %v1670
      %v1672 = vpop.xlane.xlu0 %1671
      %v1673 = vsel %vm1501, %v1460, 0.0
      %1674 = vadd.xlane.f32.xlu0 %v1673
      %v1675 = vpop.xlane.xlu0 %1674
      %v1676 = vsel %vm1501, %v1461, 0.0
      %1677 = vadd.xlane.f32.xlu0 %v1676
      %v1678 = vpop.xlane.xlu0 %1677
      %v1679 = vsel %vm1501, %v1462, 0.0
      %1680 = vadd.xlane.f32.xlu0 %v1679
      %v1681 = vpop.xlane.xlu0 %1680
      %v1682 = vsel %vm1501, %v1463, 0.0
      %1683 = vadd.xlane.f32.xlu0 %v1682
      %v1684 = vpop.xlane.xlu0 %1683
      %v1685 = vsel %vm1501, %v1464, 0.0
      %1686 = vadd.xlane.f32.xlu0 %v1685
      %v1687 = vpop.xlane.xlu0 %1686
      %v1688 = vsel %vm1501, %v1465, 0.0
      %1689 = vadd.xlane.f32.xlu0 %v1688
      %v1690 = vpop.xlane.xlu0 %1689
      %v1691 = vsel %vm1501, %v1466, 0.0
      %1692 = vadd.xlane.f32.xlu0 %v1691
      %v1693 = vpop.xlane.xlu0 %1692
      %v1694 = vsel %vm1501, %v1467, 0.0
      %1695 = vadd.xlane.f32.xlu0 %v1694
      %v1696 = vpop.xlane.xlu0 %1695
      %v1697 = vsel %vm1501, %v1468, 0.0
      %1698 = vadd.xlane.f32.xlu0 %v1697
      %v1699 = vpop.xlane.xlu0 %1698
      %v1700 = vsel %vm1501, %v1469, 0.0
      %1701 = vadd.xlane.f32.xlu0 %v1700
      %v1702 = vpop.xlane.xlu0 %1701
      %v1703 = vsel %vm1501, %v1470, 0.0
      %1704 = vadd.xlane.f32.xlu0 %v1703
      %v1705 = vpop.xlane.xlu0 %1704
      %v1706 = vsel %vm1501, %v1471, 0.0
      %1707 = vadd.xlane.f32.xlu0 %v1706
      %v1708 = vpop.xlane.xlu0 %1707
      %v1709 = vsel %vm1501, %v1472, 0.0
      %1710 = vadd.xlane.f32.xlu0 %v1709
      %v1711 = vpop.xlane.xlu0 %1710
      %v1712 = vsel %vm1501, %v1473, 0.0
      %1713 = vadd.xlane.f32.xlu0 %v1712
      %v1714 = vpop.xlane.xlu0 %1713
      %v1715 = vsel %vm1501, %v1474, 0.0
      %1716 = vadd.xlane.f32.xlu0 %v1715
      %v1717 = vpop.xlane.xlu0 %1716
      %v1718 = vsel %vm1501, %v1475, 0.0
      %1719 = vadd.xlane.f32.xlu0 %v1718
      %v1720 = vpop.xlane.xlu0 %1719
      %v1721 = vsel %vm1501, %v1476, 0.0
      %1722 = vadd.xlane.f32.xlu0 %v1721
      %v1723 = vpop.xlane.xlu0 %1722
      %v1724 = vsel %vm1501, %v1477, 0.0
      %1725 = vadd.xlane.f32.xlu0 %v1724
      %v1726 = vpop.xlane.xlu0 %1725
      %v1727 = vsel %vm1501, %v1478, 0.0
      %1728 = vadd.xlane.f32.xlu0 %v1727
      %v1729 = vpop.xlane.xlu0 %1728
      %v1730 = vsel %vm1501, %v1479, 0.0
      %1731 = vadd.xlane.f32.xlu0 %v1730
      %v1732 = vpop.xlane.xlu0 %1731
      %v1733 = vsel %vm1501, %v1480, 0.0
      %1734 = vadd.xlane.f32.xlu0 %v1733
      %v1735 = vpop.xlane.xlu0 %1734
      %v1736 = vsel %vm1501, %v1481, 0.0
      %1737 = vadd.xlane.f32.xlu0 %v1736
      %v1738 = vpop.xlane.xlu0 %1737
      %v1739 = vsel %vm1501, %v1482, 0.0
      %1740 = vadd.xlane.f32.xlu0 %v1739
      %v1741 = vpop.xlane.xlu0 %1740
      %v1742 = vsel %vm1501, %v1483, 0.0
      %1743 = vadd.xlane.f32.xlu0 %v1742
      %v1744 = vpop.xlane.xlu0 %1743
      %v1745 = vsel %vm1501, %v1484, 0.0
      %1746 = vadd.xlane.f32.xlu0 %v1745
      %v1747 = vpop.xlane.xlu0 %1746
      %v1748 = vsel %vm1501, %v1485, 0.0
      %1749 = vadd.xlane.f32.xlu0 %v1748
      %v1750 = vpop.xlane.xlu0 %1749
      %v1751 = vsel %vm1501, %v1486, 0.0
      %1752 = vadd.xlane.f32.xlu0 %v1751
      %v1753 = vpop.xlane.xlu0 %1752
      %v1754 = vsel %vm1501, %v1487, 0.0
      %1755 = vadd.xlane.f32.xlu0 %v1754
      %v1756 = vpop.xlane.xlu0 %1755
      %v1757 = vsel %vm1501, %v1488, 0.0
      %1758 = vadd.xlane.f32.xlu0 %v1757
      %v1759 = vpop.xlane.xlu0 %1758
      %v1760 = vsel %vm1501, %v1489, 0.0
      %1761 = vadd.xlane.f32.xlu0 %v1760
      %v1762 = vpop.xlane.xlu0 %1761
      %v1763 = vsel %vm1501, %v1490, 0.0
      %1764 = vadd.xlane.f32.xlu0 %v1763
      %v1765 = vpop.xlane.xlu0 %1764
      %v1766 = vsel %vm1501, %v1491, 0.0
      %1767 = vadd.xlane.f32.xlu0 %v1766
      %v1768 = vpop.xlane.xlu0 %1767
      %v1769 = vsel %vm1501, %v1492, 0.0
      %1770 = vadd.xlane.f32.xlu0 %v1769
      %v1771 = vpop.xlane.xlu0 %1770
      %v1772 = vsel %vm1501, %v1493, 0.0
      %1773 = vadd.xlane.f32.xlu0 %v1772
      %v1774 = vpop.xlane.xlu0 %1773
      %v1775 = vsel %vm1501, %v1494, 0.0
      %1776 = vadd.xlane.f32.xlu0 %v1775
      %v1777 = vpop.xlane.xlu0 %1776
      %v1778 = vsel %vm1501, %v1495, 0.0
      %1779 = vadd.xlane.f32.xlu0 %v1778
      %v1780 = vpop.xlane.xlu0 %1779
      %v1781 = vsel %vm1501, %v1496, 0.0
      %1782 = vadd.xlane.f32.xlu0 %v1781
      %v1783 = vpop.xlane.xlu0 %1782
      %v1784 = vsel %vm1501, %v1497, 0.0
      %1785 = vadd.xlane.f32.xlu0 %v1784
      %v1786 = vpop.xlane.xlu0 %1785
      %v1787 = vsel %vm1501, %v1498, 0.0
      %1788 = vadd.xlane.f32.xlu0 %v1787
      %v1789 = vpop.xlane.xlu0 %1788
      %v1790 = vsel %vm1501, %v1499, 0.0
      %1791 = vadd.xlane.f32.xlu0 %v1790
      %v1792 = vpop.xlane.xlu0 %1791
      %v1793 = vsel %vm1501, %v1500, 0.0
      %1794 = vadd.xlane.f32.xlu0 %v1793
      %v1795 = vpop.xlane.xlu0 %1794
      %v1796 = vmul.f32 %v1504, %v1504
      %v1797 = vmul.f32 %v1507, %v1507
      %v1798 = vmul.f32 %v1510, %v1510
      %v1799 = vmul.f32 %v1513, %v1513
      %v1800 = vmul.f32 %v1516, %v1516
      %v1801 = vmul.f32 %v1519, %v1519
      %v1802 = vmul.f32 %v1522, %v1522
      %v1803 = vmul.f32 %v1525, %v1525
      %v1804 = vmul.f32 %v1528, %v1528
      %v1805 = vmul.f32 %v1531, %v1531
      %v1806 = vmul.f32 %v1534, %v1534
      %v1807 = vmul.f32 %v1537, %v1537
      %v1808 = vmul.f32 %v1540, %v1540
      %v1809 = vadd.f32 %v1796, 0.0
      %v1810 = vadd.f32 %v1797, 0.0
      %v1811 = vadd.f32 %v1798, 0.0
      %v1812 = vadd.f32 %v1799, 0.0
      %v1813 = vadd.f32 %v1800, 0.0
      %v1814 = vadd.f32 %v1801, 0.0
      %v1815 = vadd.f32 %v1802, 0.0
      %v1816 = vadd.f32 %v1803, 0.0
      %v1817 = vadd.f32 %v1804, 0.0
      %v1818 = vadd.f32 %v1805, 0.0
      %v1819 = vadd.f32 %v1806, 0.0
      %v1820 = vadd.f32 %v1807, 0.0
      %v1821 = vadd.f32 %v1808, 0.0
      %v1822 = vmul.f32 %v1543, %v1543
      %v1823 = vmul.f32 %v1546, %v1546
      %v1824 = vmul.f32 %v1549, %v1549
      %v1825 = vmul.f32 %v1552, %v1552
      %v1826 = vmul.f32 %v1555, %v1555
      %v1827 = vmul.f32 %v1558, %v1558
      %v1828 = vmul.f32 %v1561, %v1561
      %v1829 = vmul.f32 %v1564, %v1564
      %v1830 = vmul.f32 %v1567, %v1567
      %v1831 = vmul.f32 %v1570, %v1570
      %v1832 = vmul.f32 %v1573, %v1573
      %v1833 = vmul.f32 %v1576, %v1576
      %vm1847 = vcmask 1045504
      %v1848 = vrot.slane %v1808, 2
      %v1849 = vrot.slane %v1822, 2
      %v1850 = vsel %vm1847, %v1848, %v1849
      %v1851 = vrot.slane %v1823, 2
      %v1852 = vsel %vm1847, %v1849, %v1851
      %v1853 = vrot.slane %v1824, 2
      %v1854 = vsel %vm1847, %v1851, %v1853
      %v1855 = vrot.slane %v1825, 2
      %v1856 = vsel %vm1847, %v1853, %v1855
      %v1857 = vrot.slane %v1826, 2
      %v1858 = vsel %vm1847, %v1855, %v1857
      %v1859 = vrot.slane %v1827, 2
      %v1860 = vsel %vm1847, %v1857, %v1859
      %v1861 = vrot.slane %v1828, 2
      %v1862 = vsel %vm1847, %v1859, %v1861
      %v1863 = vrot.slane %v1829, 2
      %v1864 = vsel %vm1847, %v1861, %v1863
      %v1865 = vrot.slane %v1830, 2
      %v1866 = vsel %vm1847, %v1863, %v1865
      %v1867 = vrot.slane %v1831, 2
      %v1868 = vsel %vm1847, %v1865, %v1867
      %v1869 = vrot.slane %v1832, 2
      %v1870 = vsel %vm1847, %v1867, %v1869
      %v1871 = vrot.slane %v1833, 2
      %v1872 = vsel %vm1847, %v1869, %v1871
      %v1886 = vadd.f32 %v1809, %v1850
      %v1887 = vadd.f32 %v1810, %v1852
      %v1888 = vadd.f32 %v1811, %v1854
      %v1889 = vadd.f32 %v1812, %v1856
      %v1890 = vadd.f32 %v1813, %v1858
      %v1891 = vadd.f32 %v1814, %v1860
      %v1892 = vadd.f32 %v1815, %v1862
      %v1893 = vadd.f32 %v1816, %v1864
      %v1894 = vadd.f32 %v1817, %v1866
      %v1895 = vadd.f32 %v1818, %v1868
      %v1896 = vadd.f32 %v1819, %v1870
      %v1897 = vadd.f32 %v1820, %v1872
      %v1898 = vadd.f32 %v1821, %v1871
      %v1899 = vmul.f32 %v1579, %v1579
      %v1900 = vmul.f32 %v1582, %v1582
      %v1901 = vmul.f32 %v1585, %v1585
      %v1902 = vmul.f32 %v1588, %v1588
      %v1903 = vmul.f32 %v1591, %v1591
      %v1904 = vmul.f32 %v1594, %v1594
      %v1905 = vmul.f32 %v1597, %v1597
      %v1906 = vmul.f32 %v1600, %v1600
      %v1907 = vmul.f32 %v1603, %v1603
      %v1908 = vmul.f32 %v1606, %v1606
      %v1909 = vmul.f32 %v1609, %v1609
      %v1910 = vmul.f32 %v1612, %v1612
      %v1923 = vrot.slane %v1833, 4
      %v1924 = vrot.slane %v1899, 4
      %v1925 = vsel %vm278, %v1923, %v1924
      %v1926 = vrot.slane %v1900, 4
      %v1927 = vsel %vm278, %v1924, %v1926
      %v1928 = vrot.slane %v1901, 4
      %v1929 = vsel %vm278, %v1926, %v1928
      %v1930 = vrot.slane %v1902, 4
      %v1931 = vsel %vm278, %v1928, %v1930
      %v1932 = vrot.slane %v1903, 4
      %v1933 = vsel %vm278, %v1930, %v1932
      %v1934 = vrot.slane %v1904, 4
      %v1935 = vsel %vm278, %v1932, %v1934
      %v1936 = vrot.slane %v1905, 4
      %v1937 = vsel %vm278, %v1934, %v1936
      %v1938 = vrot.slane %v1906, 4
      %v1939 = vsel %vm278, %v1936, %v1938
      %v1940 = vrot.slane %v1907, 4
      %v1941 = vsel %vm278, %v1938, %v1940
      %v1942 = vrot.slane %v1908, 4
      %v1943 = vsel %vm278, %v1940, %v1942
      %v1944 = vrot.slane %v1909, 4
      %v1945 = vsel %vm278, %v1942, %v1944
      %v1946 = vrot.slane %v1910, 4
      %v1947 = vsel %vm278, %v1944, %v1946
      %v1961 = vadd.f32 %v1886, %v1925
      %v1962 = vadd.f32 %v1887, %v1927
      %v1963 = vadd.f32 %v1888, %v1929
      %v1964 = vadd.f32 %v1889, %v1931
      %v1965 = vadd.f32 %v1890, %v1933
      %v1966 = vadd.f32 %v1891, %v1935
      %v1967 = vadd.f32 %v1892, %v1937
      %v1968 = vadd.f32 %v1893, %v1939
      %v1969 = vadd.f32 %v1894, %v1941
      %v1970 = vadd.f32 %v1895, %v1943
      %v1971 = vadd.f32 %v1896, %v1945
      %v1972 = vadd.f32 %v1897, %v1947
      %v1973 = vadd.f32 %v1898, %v1946
      %v1974 = vmul.f32 %v1615, %v1615
      %v1975 = vmul.f32 %v1618, %v1618
      %v1976 = vmul.f32 %v1621, %v1621
      %v1977 = vmul.f32 %v1624, %v1624
      %v1978 = vmul.f32 %v1627, %v1627
      %v1979 = vmul.f32 %v1630, %v1630
      %v1980 = vmul.f32 %v1633, %v1633
      %v1981 = vmul.f32 %v1636, %v1636
      %v1982 = vmul.f32 %v1639, %v1639
      %v1983 = vmul.f32 %v1642, %v1642
      %v1984 = vmul.f32 %v1645, %v1645
      %v1985 = vmul.f32 %v1648, %v1648
      %vm1998 = vcmask 1041408
      %v1999 = vrot.slane %v1910, 6
      %v2000 = vrot.slane %v1974, 6
      %v2001 = vsel %vm1998, %v1999, %v2000
      %v2002 = vrot.slane %v1975, 6
      %v2003 = vsel %vm1998, %v2000, %v2002
      %v2004 = vrot.slane %v1976, 6
      %v2005 = vsel %vm1998, %v2002, %v2004
      %v2006 = vrot.slane %v1977, 6
      %v2007 = vsel %vm1998, %v2004, %v2006
      %v2008 = vrot.slane %v1978, 6
      %v2009 = vsel %vm1998, %v2006, %v2008
      %v2010 = vrot.slane %v1979, 6
      %v2011 = vsel %vm1998, %v2008, %v2010
      %v2012 = vrot.slane %v1980, 6
      %v2013 = vsel %vm1998, %v2010, %v2012
      %v2014 = vrot.slane %v1981, 6
      %v2015 = vsel %vm1998, %v2012, %v2014
      %v2016 = vrot.slane %v1982, 6
      %v2017 = vsel %vm1998, %v2014, %v2016
      %v2018 = vrot.slane %v1983, 6
      %v2019 = vsel %vm1998, %v2016, %v2018
      %v2020 = vrot.slane %v1984, 6
      %v2021 = vsel %vm1998, %v2018, %v2020
      %v2022 = vrot.slane %v1985, 6
      %v2023 = vsel %vm1998, %v2020, %v2022
      %v2037 = vadd.f32 %v1961, %v2001
      %v2038 = vadd.f32 %v1962, %v2003
      %v2039 = vadd.f32 %v1963, %v2005
      %v2040 = vadd.f32 %v1964, %v2007
      %v2041 = vadd.f32 %v1965, %v2009
      %v2042 = vadd.f32 %v1966, %v2011
      %v2043 = vadd.f32 %v1967, %v2013
      %v2044 = vadd.f32 %v1968, %v2015
      %v2045 = vadd.f32 %v1969, %v2017
      %v2046 = vadd.f32 %v1970, %v2019
      %v2047 = vadd.f32 %v1971, %v2021
      %v2048 = vadd.f32 %v1972, %v2023
      %v2049 = vadd.f32 %v1973, %v2022
      %v2050 = vmul.f32 %v1651, %v1651
      %v2051 = vmul.f32 %v1654, %v1654
      %v2052 = vmul.f32 %v1657, %v1657
      %v2053 = vmul.f32 %v1660, %v1660
      %v2054 = vmul.f32 %v1663, %v1663
      %v2055 = vmul.f32 %v1666, %v1666
      %v2056 = vmul.f32 %v1669, %v1669
      %v2057 = vmul.f32 %v1672, %v1672
      %v2058 = vmul.f32 %v1675, %v1675
      %v2059 = vmul.f32 %v1678, %v1678
      %v2060 = vmul.f32 %v1681, %v1681
      %v2061 = vmul.f32 %v1684, %v1684
      %v2062 = vmul.f32 %v1687, %v1687
      %v2063 = vadd.f32 %v2037, %v2050
      %v2064 = vadd.f32 %v2038, %v2051
      %v2065 = vadd.f32 %v2039, %v2052
      %v2066 = vadd.f32 %v2040, %v2053
      %v2067 = vadd.f32 %v2041, %v2054
      %v2068 = vadd.f32 %v2042, %v2055
      %v2069 = vadd.f32 %v2043, %v2056
      %v2070 = vadd.f32 %v2044, %v2057
      %v2071 = vadd.f32 %v2045, %v2058
      %v2072 = vadd.f32 %v2046, %v2059
      %v2073 = vadd.f32 %v2047, %v2060
      %v2074 = vadd.f32 %v2048, %v2061
      %v2075 = vadd.f32 %v2049, %v2062
      %v2076 = vmul.f32 %v1690, %v1690
      %v2077 = vmul.f32 %v1693, %v1693
      %v2078 = vmul.f32 %v1696, %v1696
      %v2079 = vmul.f32 %v1699, %v1699
      %v2080 = vmul.f32 %v1702, %v1702
      %v2081 = vmul.f32 %v1705, %v1705
      %v2082 = vmul.f32 %v1708, %v1708
      %v2083 = vmul.f32 %v1711, %v1711
      %v2084 = vmul.f32 %v1714, %v1714
      %v2085 = vmul.f32 %v1717, %v1717
      %v2086 = vmul.f32 %v1720, %v1720
      %v2087 = vmul.f32 %v1723, %v1723
      %v2101 = vrot.slane %v2062, 2
      %v2102 = vrot.slane %v2076, 2
      %v2103 = vsel %vm1847, %v2101, %v2102
      %v2104 = vrot.slane %v2077, 2
      %v2105 = vsel %vm1847, %v2102, %v2104
      %v2106 = vrot.slane %v2078, 2
      %v2107 = vsel %vm1847, %v2104, %v2106
      %v2108 = vrot.slane %v2079, 2
      %v2109 = vsel %vm1847, %v2106, %v2108
      %v2110 = vrot.slane %v2080, 2
      %v2111 = vsel %vm1847, %v2108, %v2110
      %v2112 = vrot.slane %v2081, 2
      %v2113 = vsel %vm1847, %v2110, %v2112
      %v2114 = vrot.slane %v2082, 2
      %v2115 = vsel %vm1847, %v2112, %v2114
      %v2116 = vrot.slane %v2083, 2
      %v2117 = vsel %vm1847, %v2114, %v2116
      %v2118 = vrot.slane %v2084, 2
      %v2119 = vsel %vm1847, %v2116, %v2118
      %v2120 = vrot.slane %v2085, 2
      %v2121 = vsel %vm1847, %v2118, %v2120
      %v2122 = vrot.slane %v2086, 2
      %v2123 = vsel %vm1847, %v2120, %v2122
      %v2124 = vrot.slane %v2087, 2
      %v2125 = vsel %vm1847, %v2122, %v2124
      %v2139 = vadd.f32 %v2063, %v2103
      %v2140 = vadd.f32 %v2064, %v2105
      %v2141 = vadd.f32 %v2065, %v2107
      %v2142 = vadd.f32 %v2066, %v2109
      %v2143 = vadd.f32 %v2067, %v2111
      %v2144 = vadd.f32 %v2068, %v2113
      %v2145 = vadd.f32 %v2069, %v2115
      %v2146 = vadd.f32 %v2070, %v2117
      %v2147 = vadd.f32 %v2071, %v2119
      %v2148 = vadd.f32 %v2072, %v2121
      %v2149 = vadd.f32 %v2073, %v2123
      %v2150 = vadd.f32 %v2074, %v2125
      %v2151 = vadd.f32 %v2075, %v2124
      %v2152 = vmul.f32 %v1726, %v1726
      %v2153 = vmul.f32 %v1729, %v1729
      %v2154 = vmul.f32 %v1732, %v1732
      %v2155 = vmul.f32 %v1735, %v1735
      %v2156 = vmul.f32 %v1738, %v1738
      %v2157 = vmul.f32 %v1741, %v1741
      %v2158 = vmul.f32 %v1744, %v1744
      %v2159 = vmul.f32 %v1747, %v1747
      %v2160 = vmul.f32 %v1750, %v1750
      %v2161 = vmul.f32 %v1753, %v1753
      %v2162 = vmul.f32 %v1756, %v1756
      %v2163 = vmul.f32 %v1759, %v1759
      %v2176 = vrot.slane %v2087, 4
      %v2177 = vrot.slane %v2152, 4
      %v2178 = vsel %vm278, %v2176, %v2177
      %v2179 = vrot.slane %v2153, 4
      %v2180 = vsel %vm278, %v2177, %v2179
      %v2181 = vrot.slane %v2154, 4
      %v2182 = vsel %vm278, %v2179, %v2181
      %v2183 = vrot.slane %v2155, 4
      %v2184 = vsel %vm278, %v2181, %v2183
      %v2185 = vrot.slane %v2156, 4
      %v2186 = vsel %vm278, %v2183, %v2185
      %v2187 = vrot.slane %v2157, 4
      %v2188 = vsel %vm278, %v2185, %v2187
      %v2189 = vrot.slane %v2158, 4
      %v2190 = vsel %vm278, %v2187, %v2189
      %v2191 = vrot.slane %v2159, 4
      %v2192 = vsel %vm278, %v2189, %v2191
      %v2193 = vrot.slane %v2160, 4
      %v2194 = vsel %vm278, %v2191, %v2193
      %v2195 = vrot.slane %v2161, 4
      %v2196 = vsel %vm278, %v2193, %v2195
      %v2197 = vrot.slane %v2162, 4
      %v2198 = vsel %vm278, %v2195, %v2197
      %v2199 = vrot.slane %v2163, 4
      %v2200 = vsel %vm278, %v2197, %v2199
      %v2214 = vadd.f32 %v2139, %v2178
      %v2215 = vadd.f32 %v2140, %v2180
      %v2216 = vadd.f32 %v2141, %v2182
      %v2217 = vadd.f32 %v2142, %v2184
      %v2218 = vadd.f32 %v2143, %v2186
      %v2219 = vadd.f32 %v2144, %v2188
      %v2220 = vadd.f32 %v2145, %v2190
      %v2221 = vadd.f32 %v2146, %v2192
      %v2222 = vadd.f32 %v2147, %v2194
      %v2223 = vadd.f32 %v2148, %v2196
      %v2224 = vadd.f32 %v2149, %v2198
      %v2225 = vadd.f32 %v2150, %v2200
      %v2226 = vadd.f32 %v2151, %v2199
      %v2227 = vmul.f32 %v1762, %v1762
      %v2228 = vmul.f32 %v1765, %v1765
      %v2229 = vmul.f32 %v1768, %v1768
      %v2230 = vmul.f32 %v1771, %v1771
      %v2231 = vmul.f32 %v1774, %v1774
      %v2232 = vmul.f32 %v1777, %v1777
      %v2233 = vmul.f32 %v1780, %v1780
      %v2234 = vmul.f32 %v1783, %v1783
      %v2235 = vmul.f32 %v1786, %v1786
      %v2236 = vmul.f32 %v1789, %v1789
      %v2237 = vmul.f32 %v1792, %v1792
      %v2238 = vmul.f32 %v1795, %v1795
      %v2251 = vrot.slane %v2163, 6
      %v2252 = vrot.slane %v2227, 6
      %v2253 = vsel %vm1998, %v2251, %v2252
      %v2254 = vrot.slane %v2228, 6
      %v2255 = vsel %vm1998, %v2252, %v2254
      %v2256 = vrot.slane %v2229, 6
      %v2257 = vsel %vm1998, %v2254, %v2256
      %v2258 = vrot.slane %v2230, 6
      %v2259 = vsel %vm1998, %v2256, %v2258
      %v2260 = vrot.slane %v2231, 6
      %v2261 = vsel %vm1998, %v2258, %v2260
      %v2262 = vrot.slane %v2232, 6
      %v2263 = vsel %vm1998, %v2260, %v2262
      %v2264 = vrot.slane %v2233, 6
      %v2265 = vsel %vm1998, %v2262, %v2264
      %v2266 = vrot.slane %v2234, 6
      %v2267 = vsel %vm1998, %v2264, %v2266
      %v2268 = vrot.slane %v2235, 6
      %v2269 = vsel %vm1998, %v2266, %v2268
      %v2270 = vrot.slane %v2236, 6
      %v2271 = vsel %vm1998, %v2268, %v2270
      %v2272 = vrot.slane %v2237, 6
      %v2273 = vsel %vm1998, %v2270, %v2272
      %v2274 = vrot.slane %v2238, 6
      %v2275 = vsel %vm1998, %v2272, %v2274
      %v2289 = vadd.f32 %v2214, %v2253
      %v2290 = vadd.f32 %v2215, %v2255
      %v2291 = vadd.f32 %v2216, %v2257
      %v2292 = vadd.f32 %v2217, %v2259
      %v2293 = vadd.f32 %v2218, %v2261
      %v2294 = vadd.f32 %v2219, %v2263
      %v2295 = vadd.f32 %v2220, %v2265
      %v2296 = vadd.f32 %v2221, %v2267
      %v2297 = vadd.f32 %v2222, %v2269
      %v2298 = vadd.f32 %v2223, %v2271
      %v2299 = vadd.f32 %v2224, %v2273
      %v2300 = vadd.f32 %v2225, %v2275
      %v2301 = vadd.f32 %v2226, %v2274
      %v2302 = vrsqrt.pop %v2289
      %v2303 = vmul.f32 %v2289, %v2302
      %vm2304 = vcmp.eq.f32.partialorder %v2289, inf
      %v2305 = vsel %vm2304, %v2289, %v2303
      %vm2306 = vcmp.eq.f32.partialorder %v2289, 0.0
      %v2307 = vand.u32 %v2289, 2147483648
      %v2308 = vsel %vm2306, %v2307, %v2305
      %v2309 = vrsqrt.pop %v2290
      %v2310 = vmul.f32 %v2290, %v2309
      %vm2311 = vcmp.eq.f32.partialorder %v2290, inf
      %v2312 = vsel %vm2311, %v2290, %v2310
      %vm2313 = vcmp.eq.f32.partialorder %v2290, 0.0
      %v2314 = vand.u32 %v2290, 2147483648
      %v2315 = vsel %vm2313, %v2314, %v2312
      %v2316 = vrsqrt.pop %v2291
      %v2317 = vmul.f32 %v2291, %v2316
      %vm2318 = vcmp.eq.f32.partialorder %v2291, inf
      %v2319 = vsel %vm2318, %v2291, %v2317
      %vm2320 = vcmp.eq.f32.partialorder %v2291, 0.0
      %v2321 = vand.u32 %v2291, 2147483648
      %v2322 = vsel %vm2320, %v2321, %v2319
      %v2323 = vrsqrt.pop %v2292
      %v2324 = vmul.f32 %v2292, %v2323
      %vm2325 = vcmp.eq.f32.partialorder %v2292, inf
      %v2326 = vsel %vm2325, %v2292, %v2324
      %vm2327 = vcmp.eq.f32.partialorder %v2292, 0.0
      %v2328 = vand.u32 %v2292, 2147483648
      %v2329 = vsel %vm2327, %v2328, %v2326
      %v2330 = vrsqrt.pop %v2293
      %v2331 = vmul.f32 %v2293, %v2330
      %vm2332 = vcmp.eq.f32.partialorder %v2293, inf
      %v2333 = vsel %vm2332, %v2293, %v2331
      %vm2334 = vcmp.eq.f32.partialorder %v2293, 0.0
      %v2335 = vand.u32 %v2293, 2147483648
      %v2336 = vsel %vm2334, %v2335, %v2333
      %v2337 = vrsqrt.pop %v2294
      %v2338 = vmul.f32 %v2294, %v2337
      %vm2339 = vcmp.eq.f32.partialorder %v2294, inf
      %v2340 = vsel %vm2339, %v2294, %v2338
      %vm2341 = vcmp.eq.f32.partialorder %v2294, 0.0
      %v2342 = vand.u32 %v2294, 2147483648
      %v2343 = vsel %vm2341, %v2342, %v2340
      %v2344 = vrsqrt.pop %v2295
      %v2345 = vmul.f32 %v2295, %v2344
      %vm2346 = vcmp.eq.f32.partialorder %v2295, inf
      %v2347 = vsel %vm2346, %v2295, %v2345
      %vm2348 = vcmp.eq.f32.partialorder %v2295, 0.0
      %v2349 = vand.u32 %v2295, 2147483648
      %v2350 = vsel %vm2348, %v2349, %v2347
      %v2351 = vrsqrt.pop %v2296
      %v2352 = vmul.f32 %v2296, %v2351
      %vm2353 = vcmp.eq.f32.partialorder %v2296, inf
      %v2354 = vsel %vm2353, %v2296, %v2352
      %vm2355 = vcmp.eq.f32.partialorder %v2296, 0.0
      %v2356 = vand.u32 %v2296, 2147483648
      %v2357 = vsel %vm2355, %v2356, %v2354
      %v2358 = vrsqrt.pop %v2297
      %v2359 = vmul.f32 %v2297, %v2358
      %vm2360 = vcmp.eq.f32.partialorder %v2297, inf
      %v2361 = vsel %vm2360, %v2297, %v2359
      %vm2362 = vcmp.eq.f32.partialorder %v2297, 0.0
      %v2363 = vand.u32 %v2297, 2147483648
      %v2364 = vsel %vm2362, %v2363, %v2361
      %v2365 = vrsqrt.pop %v2298
      %v2366 = vmul.f32 %v2298, %v2365
      %vm2367 = vcmp.eq.f32.partialorder %v2298, inf
      %v2368 = vsel %vm2367, %v2298, %v2366
      %vm2369 = vcmp.eq.f32.partialorder %v2298, 0.0
      %v2370 = vand.u32 %v2298, 2147483648
      %v2371 = vsel %vm2369, %v2370, %v2368
      %v2372 = vrsqrt.pop %v2299
      %v2373 = vmul.f32 %v2299, %v2372
      %vm2374 = vcmp.eq.f32.partialorder %v2299, inf
      %v2375 = vsel %vm2374, %v2299, %v2373
      %vm2376 = vcmp.eq.f32.partialorder %v2299, 0.0
      %v2377 = vand.u32 %v2299, 2147483648
      %v2378 = vsel %vm2376, %v2377, %v2375
      %v2379 = vrsqrt.pop %v2300
      %v2380 = vmul.f32 %v2300, %v2379
      %vm2381 = vcmp.eq.f32.partialorder %v2300, inf
      %v2382 = vsel %vm2381, %v2300, %v2380
      %vm2383 = vcmp.eq.f32.partialorder %v2300, 0.0
      %v2384 = vand.u32 %v2300, 2147483648
      %v2385 = vsel %vm2383, %v2384, %v2382
      %v2386 = vrsqrt.pop %v2301
      %v2387 = vmul.f32 %v2301, %v2386
      %vm2388 = vcmp.eq.f32.partialorder %v2301, inf
      %v2389 = vsel %vm2388, %v2301, %v2387
      %vm2390 = vcmp.eq.f32.partialorder %v2301, 0.0
      %v2391 = vand.u32 %v2301, 2147483648
      %v2392 = vsel %vm2390, %v2391, %v2389
      %v2393 = vadd.f32 %v2289, 1.0
      %v2394 = vadd.f32 %v2290, 1.0
      %v2395 = vadd.f32 %v2291, 1.0
      %v2396 = vadd.f32 %v2292, 1.0
      %v2397 = vadd.f32 %v2293, 1.0
      %v2398 = vadd.f32 %v2294, 1.0
      %v2399 = vadd.f32 %v2295, 1.0
      %v2400 = vadd.f32 %v2296, 1.0
      %v2401 = vadd.f32 %v2297, 1.0
      %v2402 = vadd.f32 %v2298, 1.0
      %v2403 = vadd.f32 %v2299, 1.0
      %v2404 = vadd.f32 %v2300, 1.0
      %v2405 = vadd.f32 %v2301, 1.0
      %v2406 = vadd.f32 %v2308, 1e-08
      %v2407 = vadd.f32 %v2315, 1e-08
      %v2408 = vadd.f32 %v2322, 1e-08
      %v2409 = vadd.f32 %v2329, 1e-08
      %v2410 = vadd.f32 %v2336, 1e-08
      %v2411 = vadd.f32 %v2343, 1e-08
      %v2412 = vadd.f32 %v2350, 1e-08
      %v2413 = vadd.f32 %v2357, 1e-08
      %v2414 = vadd.f32 %v2364, 1e-08
      %v2415 = vadd.f32 %v2371, 1e-08
      %v2416 = vadd.f32 %v2378, 1e-08
      %v2417 = vadd.f32 %v2385, 1e-08
      %v2418 = vadd.f32 %v2392, 1e-08
      %v2419 = vmul.f32 %v2393, %v2406
      %v2420 = vmul.f32 %v2394, %v2407
      %v2421 = vmul.f32 %v2395, %v2408
      %v2422 = vmul.f32 %v2396, %v2409
      %v2423 = vmul.f32 %v2397, %v2410
      %v2424 = vmul.f32 %v2398, %v2411
      %v2425 = vmul.f32 %v2399, %v2412
      %v2426 = vmul.f32 %v2400, %v2413
      %v2427 = vmul.f32 %v2401, %v2414
      %v2428 = vmul.f32 %v2402, %v2415
      %v2429 = vmul.f32 %v2403, %v2416
      %v2430 = vmul.f32 %v2404, %v2417
      %v2431 = vmul.f32 %v2405, %v2418
      %v2432 = vrcp.pop %v2419
      %v2433 = vmul.f32 %v2289, %v2432
      %v2434 = vrcp.pop %v2420
      %v2435 = vmul.f32 %v2290, %v2434
      %v2436 = vrcp.pop %v2421
      %v2437 = vmul.f32 %v2291, %v2436
      %v2438 = vrcp.pop %v2422
      %v2439 = vmul.f32 %v2292, %v2438
      %v2440 = vrcp.pop %v2423
      %v2441 = vmul.f32 %v2293, %v2440
      %v2442 = vrcp.pop %v2424
      %v2443 = vmul.f32 %v2294, %v2442
      %v2444 = vrcp.pop %v2425
      %v2445 = vmul.f32 %v2295, %v2444
      %v2446 = vrcp.pop %v2426
      %v2447 = vmul.f32 %v2296, %v2446
      %v2448 = vrcp.pop %v2427
      %v2449 = vmul.f32 %v2297, %v2448
      %v2450 = vrcp.pop %v2428
      %v2451 = vmul.f32 %v2298, %v2450
      %v2452 = vrcp.pop %v2429
      %v2453 = vmul.f32 %v2299, %v2452
      %v2454 = vrcp.pop %v2430
      %v2455 = vmul.f32 %v2300, %v2454
      %v2456 = vrcp.pop %v2431
      %v2457 = vmul.f32 %v2301, %v2456
      %v2471 = vrot.slane %v2433, 6
      %v2472 = vrot.slane %v2435, 6
      %v2473 = vsel %vm1998, %v2471, %v2472
      %v2474 = vrot.slane %v2437, 6
      %v2475 = vsel %vm1998, %v2472, %v2474
      %v2476 = vrot.slane %v2439, 6
      %v2477 = vsel %vm1998, %v2474, %v2476
      %v2478 = vrot.slane %v2441, 6
      %v2479 = vsel %vm1998, %v2476, %v2478
      %v2480 = vrot.slane %v2443, 6
      %v2481 = vsel %vm1998, %v2478, %v2480
      %v2482 = vrot.slane %v2445, 6
      %v2483 = vsel %vm1998, %v2480, %v2482
      %v2484 = vrot.slane %v2447, 6
      %v2485 = vsel %vm1998, %v2482, %v2484
      %v2486 = vrot.slane %v2449, 6
      %v2487 = vsel %vm1998, %v2484, %v2486
      %v2488 = vrot.slane %v2451, 6
      %v2489 = vsel %vm1998, %v2486, %v2488
      %v2490 = vrot.slane %v2453, 6
      %v2491 = vsel %vm1998, %v2488, %v2490
      %v2492 = vrot.slane %v2455, 6
      %v2493 = vsel %vm1998, %v2490, %v2492
      %v2494 = vrot.slane %v2457, 6
      %v2495 = vsel %vm1998, %v2492, %v2494
      %v2498 = vrot.slane %v2433, 4
      %v2499 = vrot.slane %v2435, 4
      %v2500 = vsel %vm278, %v2498, %v2499
      %v2501 = vrot.slane %v2437, 4
      %v2502 = vsel %vm278, %v2499, %v2501
      %v2503 = vrot.slane %v2439, 4
      %v2504 = vsel %vm278, %v2501, %v2503
      %v2505 = vrot.slane %v2441, 4
      %v2506 = vsel %vm278, %v2503, %v2505
      %v2507 = vrot.slane %v2443, 4
      %v2508 = vsel %vm278, %v2505, %v2507
      %v2509 = vrot.slane %v2445, 4
      %v2510 = vsel %vm278, %v2507, %v2509
      %v2511 = vrot.slane %v2447, 4
      %v2512 = vsel %vm278, %v2509, %v2511
      %v2513 = vrot.slane %v2449, 4
      %v2514 = vsel %vm278, %v2511, %v2513
      %v2515 = vrot.slane %v2451, 4
      %v2516 = vsel %vm278, %v2513, %v2515
      %v2517 = vrot.slane %v2453, 4
      %v2518 = vsel %vm278, %v2515, %v2517
      %v2519 = vrot.slane %v2455, 4
      %v2520 = vsel %vm278, %v2517, %v2519
      %v2521 = vrot.slane %v2457, 4
      %v2522 = vsel %vm278, %v2519, %v2521
      %v2525 = vrot.slane %v2433, 2
      %v2526 = vrot.slane %v2435, 2
      %v2527 = vsel %vm1847, %v2525, %v2526
      %v2528 = vrot.slane %v2437, 2
      %v2529 = vsel %vm1847, %v2526, %v2528
      %v2530 = vrot.slane %v2439, 2
      %v2531 = vsel %vm1847, %v2528, %v2530
      %v2532 = vrot.slane %v2441, 2
      %v2533 = vsel %vm1847, %v2530, %v2532
      %v2534 = vrot.slane %v2443, 2
      %v2535 = vsel %vm1847, %v2532, %v2534
      %v2536 = vrot.slane %v2445, 2
      %v2537 = vsel %vm1847, %v2534, %v2536
      %v2538 = vrot.slane %v2447, 2
      %v2539 = vsel %vm1847, %v2536, %v2538
      %v2540 = vrot.slane %v2449, 2
      %v2541 = vsel %vm1847, %v2538, %v2540
      %v2542 = vrot.slane %v2451, 2
      %v2543 = vsel %vm1847, %v2540, %v2542
      %v2544 = vrot.slane %v2453, 2
      %v2545 = vsel %vm1847, %v2542, %v2544
      %v2546 = vrot.slane %v2455, 2
      %v2547 = vsel %vm1847, %v2544, %v2546
      %v2548 = vrot.slane %v2457, 2
      %v2549 = vsel %vm1847, %v2546, %v2548
      %v2551 = vsel %vm1998, %v2457, %v2471
      %v2552 = vsel %vm278, %v2495, %v2498
      %v2553 = vsel %vm1847, %v2522, %v2525
      %v2554 = vld [vmem:[%s5] sm:$0xff]
      %v2555 = vld [vmem:[%s5 + $0x8] sm:$0xff]
      %v2556 = vld [vmem:[%s5 + $0x10] sm:$0xff]
      %v2557 = vld [vmem:[%s5 + $0x18] sm:$0xff]
      %v2558 = vld [vmem:[%s5 + $0x20] sm:$0xff]
      %v2559 = vld [vmem:[%s5 + $0x28] sm:$0xff]
      %v2560 = vld [vmem:[%s5 + $0x30] sm:$0xff]
      %v2561 = vld [vmem:[%s5 + $0x38] sm:$0xff]
      %v2562 = vld [vmem:[%s5 + $0x40] sm:$0xff]
      %v2563 = vld [vmem:[%s5 + $0x48] sm:$0xff]
      %v2564 = vld [vmem:[%s5 + $0x50] sm:$0xff]
      %v2565 = vld [vmem:[%s5 + $0x58] sm:$0xff]
      %v2566 = vld [vmem:[%s5 + $0x60] sm:$0xff]
      %v2567 = vld [vmem:[%s5 + $0x68] sm:$0xff]
      %2568 = vset.pattern.permute.xlu0 0
      %2569 = vperm.xlu0 %2568, %v2433
      %v2570 = vpop.permute.xlu0 %2569
      %2572 = vset.pattern.permute.xlu0 0
      %2573 = vperm.xlu0 %2572, %v2435
      %v2574 = vpop.permute.xlu0 %2573
      %2576 = vset.pattern.permute.xlu0 0
      %2577 = vperm.xlu0 %2576, %v2437
      %v2578 = vpop.permute.xlu0 %2577
      %2580 = vset.pattern.permute.xlu0 0
      %2581 = vperm.xlu0 %2580, %v2439
      %v2582 = vpop.permute.xlu0 %2581
      %2584 = vset.pattern.permute.xlu0 0
      %2585 = vperm.xlu0 %2584, %v2441
      %v2586 = vpop.permute.xlu0 %2585
      %2588 = vset.pattern.permute.xlu0 0
      %2589 = vperm.xlu0 %2588, %v2443
      %v2590 = vpop.permute.xlu0 %2589
      %2592 = vset.pattern.permute.xlu0 0
      %2593 = vperm.xlu0 %2592, %v2445
      %v2594 = vpop.permute.xlu0 %2593
      %2596 = vset.pattern.permute.xlu0 0
      %2597 = vperm.xlu0 %2596, %v2447
      %v2598 = vpop.permute.xlu0 %2597
      %2600 = vset.pattern.permute.xlu0 0
      %2601 = vperm.xlu0 %2600, %v2449
      %v2602 = vpop.permute.xlu0 %2601
      %2604 = vset.pattern.permute.xlu0 0
      %2605 = vperm.xlu0 %2604, %v2451
      %v2606 = vpop.permute.xlu0 %2605
      %2608 = vset.pattern.permute.xlu0 0
      %2609 = vperm.xlu0 %2608, %v2453
      %v2610 = vpop.permute.xlu0 %2609
      %2612 = vset.pattern.permute.xlu0 0
      %2613 = vperm.xlu0 %2612, %v2455
      %v2614 = vpop.permute.xlu0 %2613
      %2617 = vset.pattern.permute.xlu0 0
      %2618 = vperm.xlu0 %2617, %v2551
      %v2619 = vpop.permute.xlu0 %2618
      %2621 = vset.pattern.permute.xlu0 0
      %2622 = vperm.xlu0 %2621, %v2473
      %v2623 = vpop.permute.xlu0 %2622
      %2625 = vset.pattern.permute.xlu0 0
      %2626 = vperm.xlu0 %2625, %v2475
      %v2627 = vpop.permute.xlu0 %2626
      %2629 = vset.pattern.permute.xlu0 0
      %2630 = vperm.xlu0 %2629, %v2477
      %v2631 = vpop.permute.xlu0 %2630
      %2633 = vset.pattern.permute.xlu0 0
      %2634 = vperm.xlu0 %2633, %v2479
      %v2635 = vpop.permute.xlu0 %2634
      %2637 = vset.pattern.permute.xlu0 0
      %2638 = vperm.xlu0 %2637, %v2481
      %v2639 = vpop.permute.xlu0 %2638
      %2641 = vset.pattern.permute.xlu0 0
      %2642 = vperm.xlu0 %2641, %v2483
      %v2643 = vpop.permute.xlu0 %2642
      %2645 = vset.pattern.permute.xlu0 0
      %2646 = vperm.xlu0 %2645, %v2485
      %v2647 = vpop.permute.xlu0 %2646
      %2649 = vset.pattern.permute.xlu0 0
      %2650 = vperm.xlu0 %2649, %v2487
      %v2651 = vpop.permute.xlu0 %2650
      %2653 = vset.pattern.permute.xlu0 0
      %2654 = vperm.xlu0 %2653, %v2489
      %v2655 = vpop.permute.xlu0 %2654
      %2657 = vset.pattern.permute.xlu0 0
      %2658 = vperm.xlu0 %2657, %v2491
      %v2659 = vpop.permute.xlu0 %2658
      %2661 = vset.pattern.permute.xlu0 0
      %2662 = vperm.xlu0 %2661, %v2493
      %v2663 = vpop.permute.xlu0 %2662
      %2666 = vset.pattern.permute.xlu0 0
      %2667 = vperm.xlu0 %2666, %v2552
      %v2668 = vpop.permute.xlu0 %2667
      %2670 = vset.pattern.permute.xlu0 0
      %2671 = vperm.xlu0 %2670, %v2500
      %v2672 = vpop.permute.xlu0 %2671
      %2674 = vset.pattern.permute.xlu0 0
      %2675 = vperm.xlu0 %2674, %v2502
      %v2676 = vpop.permute.xlu0 %2675
      %2678 = vset.pattern.permute.xlu0 0
      %2679 = vperm.xlu0 %2678, %v2504
      %v2680 = vpop.permute.xlu0 %2679
      %2682 = vset.pattern.permute.xlu0 0
      %2683 = vperm.xlu0 %2682, %v2506
      %v2684 = vpop.permute.xlu0 %2683
      %2686 = vset.pattern.permute.xlu0 0
      %2687 = vperm.xlu0 %2686, %v2508
      %v2688 = vpop.permute.xlu0 %2687
      %2690 = vset.pattern.permute.xlu0 0
      %2691 = vperm.xlu0 %2690, %v2510
      %v2692 = vpop.permute.xlu0 %2691
      %2694 = vset.pattern.permute.xlu0 0
      %2695 = vperm.xlu0 %2694, %v2512
      %v2696 = vpop.permute.xlu0 %2695
      %2698 = vset.pattern.permute.xlu0 0
      %2699 = vperm.xlu0 %2698, %v2514
      %v2700 = vpop.permute.xlu0 %2699
      %2702 = vset.pattern.permute.xlu0 0
      %2703 = vperm.xlu0 %2702, %v2516
      %v2704 = vpop.permute.xlu0 %2703
      %2706 = vset.pattern.permute.xlu0 0
      %2707 = vperm.xlu0 %2706, %v2518
      %v2708 = vpop.permute.xlu0 %2707
      %2710 = vset.pattern.permute.xlu0 0
      %2711 = vperm.xlu0 %2710, %v2520
      %v2712 = vpop.permute.xlu0 %2711
      %2715 = vset.pattern.permute.xlu0 0
      %2716 = vperm.xlu0 %2715, %v2553
      %v2717 = vpop.permute.xlu0 %2716
      %2719 = vset.pattern.permute.xlu0 0
      %2720 = vperm.xlu0 %2719, %v2527
      %v2721 = vpop.permute.xlu0 %2720
      %2723 = vset.pattern.permute.xlu0 0
      %2724 = vperm.xlu0 %2723, %v2529
      %v2725 = vpop.permute.xlu0 %2724
      %2727 = vset.pattern.permute.xlu0 0
      %2728 = vperm.xlu0 %2727, %v2531
      %v2729 = vpop.permute.xlu0 %2728
      %2731 = vset.pattern.permute.xlu0 0
      %2732 = vperm.xlu0 %2731, %v2533
      %v2733 = vpop.permute.xlu0 %2732
      %2735 = vset.pattern.permute.xlu0 0
      %2736 = vperm.xlu0 %2735, %v2535
      %v2737 = vpop.permute.xlu0 %2736
      %2739 = vset.pattern.permute.xlu0 0
      %2740 = vperm.xlu0 %2739, %v2537
      %v2741 = vpop.permute.xlu0 %2740
      %2743 = vset.pattern.permute.xlu0 0
      %2744 = vperm.xlu0 %2743, %v2539
      %v2745 = vpop.permute.xlu0 %2744
      %2747 = vset.pattern.permute.xlu0 0
      %2748 = vperm.xlu0 %2747, %v2541
      %v2749 = vpop.permute.xlu0 %2748
      %2751 = vset.pattern.permute.xlu0 0
      %2752 = vperm.xlu0 %2751, %v2543
      %v2753 = vpop.permute.xlu0 %2752
      %2755 = vset.pattern.permute.xlu0 0
      %2756 = vperm.xlu0 %2755, %v2545
      %v2757 = vpop.permute.xlu0 %2756
      %2759 = vset.pattern.permute.xlu0 0
      %2760 = vperm.xlu0 %2759, %v2547
      %v2761 = vpop.permute.xlu0 %2760
      %2763 = vset.pattern.permute.xlu0 0
      %2764 = vperm.xlu0 %2763, %v2549
      %v2765 = vpop.permute.xlu0 %2764
      %v2767 = vmul.f32 %v2570, %v357
      %v2768 = vmul.f32 %v2574, %v358
      %v2769 = vmul.f32 %v2578, %v359
      %v2770 = vmul.f32 %v2582, %v360
      %v2771 = vmul.f32 %v2586, %v361
      %v2772 = vmul.f32 %v2590, %v362
      %v2773 = vmul.f32 %v2594, %v363
      %v2774 = vmul.f32 %v2598, %v364
      %v2775 = vmul.f32 %v2602, %v365
      %v2776 = vmul.f32 %v2606, %v366
      %v2777 = vmul.f32 %v2610, %v367
      %v2778 = vmul.f32 %v2614, %v368
      %v2779 = vmul.f32 %v2619, %v369
      %v2780 = vmul.f32 %v2623, %v370
      %v2781 = vmul.f32 %v2627, %v371
      %v2782 = vmul.f32 %v2631, %v372
      %v2783 = vmul.f32 %v2635, %v373
      %v2784 = vmul.f32 %v2639, %v374
      %v2785 = vmul.f32 %v2643, %v375
      %v2786 = vmul.f32 %v2647, %v376
      %v2787 = vmul.f32 %v2651, %v377
      %v2788 = vmul.f32 %v2655, %v378
      %v2789 = vmul.f32 %v2659, %v379
      %v2790 = vmul.f32 %v2663, %v380
      %v2791 = vmul.f32 %v2668, %v381
      %v2792 = vmul.f32 %v2672, %v382
      %v2793 = vmul.f32 %v2676, %v383
      %v2794 = vmul.f32 %v2680, %v384
      %v2795 = vmul.f32 %v2684, %v385
      %v2796 = vmul.f32 %v2688, %v386
      %v2797 = vmul.f32 %v2692, %v387
      %v2798 = vmul.f32 %v2696, %v388
      %v2799 = vmul.f32 %v2700, %v389
      %v2800 = vmul.f32 %v2704, %v390
      %v2801 = vmul.f32 %v2708, %v391
      %v2802 = vmul.f32 %v2712, %v392
      %v2803 = vmul.f32 %v2717, %v393
      %v2804 = vmul.f32 %v2721, %v394
      %v2805 = vmul.f32 %v2725, %v395
      %v2806 = vmul.f32 %v2729, %v396
      %v2807 = vmul.f32 %v2733, %v397
      %v2808 = vmul.f32 %v2737, %v398
      %v2809 = vmul.f32 %v2741, %v399
      %v2810 = vmul.f32 %v2745, %v400
      %v2811 = vmul.f32 %v2749, %v401
      %v2812 = vmul.f32 %v2753, %v402
      %v2813 = vmul.f32 %v2757, %v403
      %v2814 = vmul.f32 %v2761, %v404
      %v2815 = vmul.f32 %v2765, %v405
      %v2816 = vmul.f32 %v2570, %v406
      %v2817 = vmul.f32 %v2574, %v407
      %v2818 = vmul.f32 %v2578, %v408
      %v2819 = vmul.f32 %v2582, %v409
      %v2820 = vmul.f32 %v2586, %v410
      %v2821 = vmul.f32 %v2590, %v411
      %v2822 = vmul.f32 %v2594, %v412
      %v2823 = vmul.f32 %v2598, %v413
      %v2824 = vmul.f32 %v2602, %v414
      %v2825 = vmul.f32 %v2606, %v415
      %v2826 = vmul.f32 %v2610, %v416
      %v2827 = vmul.f32 %v2614, %v417
      %v2828 = vmul.f32 %v2619, %v418
      %v2829 = vmul.f32 %v2623, %v419
      %v2830 = vmul.f32 %v2627, %v420
      %v2831 = vmul.f32 %v2631, %v421
      %v2832 = vmul.f32 %v2635, %v422
      %v2833 = vmul.f32 %v2639, %v423
      %v2834 = vmul.f32 %v2643, %v424
      %v2835 = vmul.f32 %v2647, %v425
      %v2836 = vmul.f32 %v2651, %v426
      %v2837 = vmul.f32 %v2655, %v427
      %v2838 = vmul.f32 %v2659, %v428
      %v2839 = vmul.f32 %v2663, %v429
      %v2840 = vmul.f32 %v2668, %v430
      %v2841 = vmul.f32 %v2672, %v431
      %v2842 = vmul.f32 %v2676, %v432
      %v2843 = vmul.f32 %v2680, %v433
      %v2844 = vmul.f32 %v2684, %v434
      %v2845 = vmul.f32 %v2688, %v435
      %v2846 = vmul.f32 %v2692, %v436
      %v2847 = vmul.f32 %v2696, %v437
      %v2848 = vmul.f32 %v2700, %v438
      %v2849 = vmul.f32 %v2704, %v439
      %v2850 = vmul.f32 %v2708, %v440
      %v2851 = vmul.f32 %v2712, %v441
      %v2852 = vmul.f32 %v2717, %v442
      %v2853 = vmul.f32 %v2721, %v443
      %v2854 = vmul.f32 %v2725, %v444
      %v2855 = vmul.f32 %v2729, %v445
      %v2856 = vmul.f32 %v2733, %v446
      %v2857 = vmul.f32 %v2737, %v447
      %v2858 = vmul.f32 %v2741, %v448
      %v2859 = vmul.f32 %v2745, %v449
      %v2860 = vmul.f32 %v2749, %v450
      %v2861 = vmul.f32 %v2753, %v451
      %v2862 = vmul.f32 %v2757, %v452
      %v2863 = vmul.f32 %v2761, %v453
      %v2864 = vmul.f32 %v2765, %v454
      %v2866 = vsel %vm553, %v2560, 0
      %v2869 = vsel %vm553, %v2567, 0
      %2871 = vmatprep.subr.mxu0 0.0
      %2872 = vmatpush1.msra.mxu0 %v2767
      %2873 = vmatprep.subr.mxu0 0.0
      %2874 = vmatpush1.msra.mxu0 %v2768
      %2875 = vmatprep.subr.mxu0 0.0
      %2876 = vmatpush1.msra.mxu0 %v2769
      %2877 = vmatprep.subr.mxu0 0.0
      %2878 = vmatpush1.msra.mxu0 %v2770
      %2879 = vmatprep.subr.mxu0 0.0
      %2880 = vmatpush1.msra.mxu0 %v2771
      %2881 = vmatprep.subr.mxu0 0.0
      %2882 = vmatpush1.msra.mxu0 %v2772
      %2883 = vmatprep.subr.mxu0 0.0
      %2884 = vmatpush1.msra.mxu0 %v2773
      %2885 = vmatprep.subr.mxu0 0.0
      %2886 = vmatpush1.msra.mxu0 %v2774
      %2887 = vmatprep.subr.mxu0 0.0
      %2888 = vmatpush1.msra.mxu0 %v2775
      %2889 = vmatprep.subr.mxu0 0.0
      %2890 = vmatpush1.msra.mxu0 %v2776
      %2891 = vmatprep.subr.mxu0 0.0
      %2892 = vmatpush1.msra.mxu0 %v2777
      %2893 = vmatprep.subr.mxu0 0.0
      %2894 = vmatpush1.msra.mxu0 %v2778
      %2895 = vmatprep.subr.mxu0 0.0
      %2896 = vmatpush1.msra.mxu0 %v2779
      %2897 = vmatprep.subr.mxu0 0.0
      %2898 = vmatpush1.msra.mxu0 %v2780
      %2899 = vmatprep.subr.mxu0 0.0
      %2900 = vmatpush1.msra.mxu0 %v2781
      %2901 = vmatprep.subr.mxu0 0.0
      %2902 = vmatpush1.msra.mxu0 %v2782
      %2903 = vmatprep.subr.mxu0 0.0
      %2904 = vmatpush1.msra.mxu0 %v2783
      %2905 = vmatprep.subr.mxu0 0.0
      %2906 = vmatpush1.msra.mxu0 %v2784
      %2907 = vmatprep.subr.mxu0 0.0
      %2908 = vmatpush1.msra.mxu0 %v2785
      %2909 = vmatprep.subr.mxu0 0.0
      %2910 = vmatpush1.msra.mxu0 %v2786
      %2911 = vmatprep.subr.mxu0 0.0
      %2912 = vmatpush1.msra.mxu0 %v2787
      %2913 = vmatprep.subr.mxu0 0.0
      %2914 = vmatpush1.msra.mxu0 %v2788
      %2915 = vmatprep.subr.mxu0 0.0
      %2916 = vmatpush1.msra.mxu0 %v2789
      %2917 = vmatprep.subr.mxu0 0.0
      %2918 = vmatpush1.msra.mxu0 %v2790
      %2919 = vmatprep.subr.mxu0 0.0
      %2920 = vmatpush1.msra.mxu0 %v2791
      %2921 = vmatprep.subr.mxu0 0.0
      %2922 = vmatpush1.msra.mxu0 %v2792
      %2923 = vmatprep.subr.mxu0 0.0
      %2924 = vmatpush1.msra.mxu0 %v2793
      %2925 = vmatprep.subr.mxu0 0.0
      %2926 = vmatpush1.msra.mxu0 %v2794
      %2927 = vmatprep.subr.mxu0 0.0
      %2928 = vmatpush1.msra.mxu0 %v2795
      %2929 = vmatprep.subr.mxu0 0.0
      %2930 = vmatpush1.msra.mxu0 %v2796
      %2931 = vmatprep.subr.mxu0 0.0
      %2932 = vmatpush1.msra.mxu0 %v2797
      %2933 = vmatprep.subr.mxu0 0.0
      %2934 = vmatpush1.msra.mxu0 %v2798
      %2935 = vmatprep.mubr.f32.mxu0 %v2555
      %2936 = vmatmul.mubr.f32.gmra.mrb[0].mxu0 %v2554
      %v2937 = vpop.f32.mrb[0].mxu0
      %v2938 = vadd.f32 0.0, %v2937
      %v2939 = vpop.f32.mrb[0].mxu0
      %2940 = vmatprep.mubr.f32.mxu0 %v2562
      %2941 = vmatmul.mubr.f32.gmra.mrb[0].mxu0 %v2561
      %v2942 = vpop.f32.mrb[0].mxu0
      %v2943 = vadd.f32 0.0, %v2942
      %v2944 = vpop.f32.mrb[0].mxu0
      %2945 = vdwg.mxu0
      %2946 = vmatprep.subr.mxu0 0.0
      %2947 = vmatpush1.msra.mxu0 %v2799
      %2948 = vmatprep.subr.mxu0 0.0
      %2949 = vmatpush1.msra.mxu0 %v2800
      %2950 = vmatprep.subr.mxu0 0.0
      %2951 = vmatpush1.msra.mxu0 %v2801
      %2952 = vmatprep.subr.mxu0 0.0
      %2953 = vmatpush1.msra.mxu0 %v2802
      %2954 = vmatprep.subr.mxu0 0.0
      %2955 = vmatpush1.msra.mxu0 %v2803
      %2956 = vmatprep.subr.mxu0 0.0
      %2957 = vmatpush1.msra.mxu0 %v2804
      %2958 = vmatprep.subr.mxu0 0.0
      %2959 = vmatpush1.msra.mxu0 %v2805
      %2960 = vmatprep.subr.mxu0 0.0
      %2961 = vmatpush1.msra.mxu0 %v2806
      %2962 = vmatprep.subr.mxu0 0.0
      %2963 = vmatpush1.msra.mxu0 %v2807
      %2964 = vmatprep.subr.mxu0 0.0
      %2965 = vmatpush1.msra.mxu0 %v2808
      %2966 = vmatprep.subr.mxu0 0.0
      %2967 = vmatpush1.msra.mxu0 %v2809
      %2968 = vmatprep.subr.mxu0 0.0
      %2969 = vmatpush1.msra.mxu0 %v2810
      %2970 = vmatprep.subr.mxu0 0.0
      %2971 = vmatpush1.msra.mxu0 %v2811
      %2972 = vmatprep.subr.mxu0 0.0
      %2973 = vmatpush1.msra.mxu0 %v2812
      %2974 = vmatprep.subr.mxu0 0.0
      %2975 = vmatpush1.msra.mxu0 %v2813
      %2976 = vmatprep.subr.mxu0 0.0
      %2977 = vmatpush1.msra.mxu0 %v2814
      %2978 = vmatprep.subr.mxu0 0.0
      %2979 = vmatpush1.msra.mxu0 %v2815
      %2980 = vmatprep.subr.mxu0 0.0
      %2981 = vmatpush1.msra.mxu0 %v2816
      %2982 = vmatprep.subr.mxu0 0.0
      %2983 = vmatpush1.msra.mxu0 %v2817
      %2984 = vmatprep.subr.mxu0 0.0
      %2985 = vmatpush1.msra.mxu0 %v2818
      %2986 = vmatprep.subr.mxu0 0.0
      %2987 = vmatpush1.msra.mxu0 %v2819
      %2988 = vmatprep.subr.mxu0 0.0
      %2989 = vmatpush1.msra.mxu0 %v2820
      %2990 = vmatprep.subr.mxu0 0.0
      %2991 = vmatpush1.msra.mxu0 %v2821
      %2992 = vmatprep.subr.mxu0 0.0
      %2993 = vmatpush1.msra.mxu0 %v2822
      %2994 = vmatprep.subr.mxu0 0.0
      %2995 = vmatpush1.msra.mxu0 %v2823
      %2996 = vmatprep.subr.mxu0 0.0
      %2997 = vmatpush1.msra.mxu0 %v2824
      %2998 = vmatprep.subr.mxu0 0.0
      %2999 = vmatpush1.msra.mxu0 %v2825
      %3000 = vmatprep.subr.mxu0 0.0
      %3001 = vmatpush1.msra.mxu0 %v2826
      %3002 = vmatprep.subr.mxu0 0.0
      %3003 = vmatpush1.msra.mxu0 %v2827
      %3004 = vmatprep.subr.mxu0 0.0
      %3005 = vmatpush1.msra.mxu0 %v2828
      %3006 = vmatprep.subr.mxu0 0.0
      %3007 = vmatpush1.msra.mxu0 %v2829
      %3008 = vmatprep.subr.mxu0 0.0
      %3009 = vmatpush1.msra.mxu0 %v2830
      %3010 = vmatprep.mubr.f32.mxu0 %v2557
      %3011 = vmatmul.mubr.f32.gmra.mrb[0].mxu0 %v2556
      %v3012 = vpop.f32.mrb[0].mxu0
      %v3013 = vadd.f32 %v2938, %v3012
      %v3014 = vpop.f32.mrb[0].mxu0
      %3015 = vmatprep.mubr.f32.mxu0 %v2564
      %3016 = vmatmul.mubr.f32.gmra.mrb[0].mxu0 %v2563
      %v3017 = vpop.f32.mrb[0].mxu0
      %v3018 = vadd.f32 %v2943, %v3017
      %v3019 = vpop.f32.mrb[0].mxu0
      %3020 = vdwg.mxu0
      %3021 = vmatprep.subr.mxu0 0.0
      %3022 = vmatpush1.msra.mxu0 %v2831
      %3023 = vmatprep.subr.mxu0 0.0
      %3024 = vmatpush1.msra.mxu0 %v2832
      %3025 = vmatprep.subr.mxu0 0.0
      %3026 = vmatpush1.msra.mxu0 %v2833
      %3027 = vmatprep.subr.mxu0 0.0
      %3028 = vmatpush1.msra.mxu0 %v2834
      %3029 = vmatprep.subr.mxu0 0.0
      %3030 = vmatpush1.msra.mxu0 %v2835
      %3031 = vmatprep.subr.mxu0 0.0
      %3032 = vmatpush1.msra.mxu0 %v2836
      %3033 = vmatprep.subr.mxu0 0.0
      %3034 = vmatpush1.msra.mxu0 %v2837
      %3035 = vmatprep.subr.mxu0 0.0
      %3036 = vmatpush1.msra.mxu0 %v2838
      %3037 = vmatprep.subr.mxu0 0.0
      %3038 = vmatpush1.msra.mxu0 %v2839
      %3039 = vmatprep.subr.mxu0 0.0
      %3040 = vmatpush1.msra.mxu0 %v2840
      %3041 = vmatprep.subr.mxu0 0.0
      %3042 = vmatpush1.msra.mxu0 %v2841
      %3043 = vmatprep.subr.mxu0 0.0
      %3044 = vmatpush1.msra.mxu0 %v2842
      %3045 = vmatprep.subr.mxu0 0.0
      %3046 = vmatpush1.msra.mxu0 %v2843
      %3047 = vmatprep.subr.mxu0 0.0
      %3048 = vmatpush1.msra.mxu0 %v2844
      %3049 = vmatprep.subr.mxu0 0.0
      %3050 = vmatpush1.msra.mxu0 %v2845
      %3051 = vmatprep.subr.mxu0 0.0
      %3052 = vmatpush1.msra.mxu0 %v2846
      %3053 = vmatprep.subr.mxu0 0.0
      %3054 = vmatpush1.msra.mxu0 %v2847
      %3055 = vmatprep.subr.mxu0 0.0
      %3056 = vmatpush1.msra.mxu0 %v2848
      %3057 = vmatprep.subr.mxu0 0.0
      %3058 = vmatpush1.msra.mxu0 %v2849
      %3059 = vmatprep.subr.mxu0 0.0
      %3060 = vmatpush1.msra.mxu0 %v2850
      %3061 = vmatprep.subr.mxu0 0.0
      %3062 = vmatpush1.msra.mxu0 %v2851
      %3063 = vmatprep.subr.mxu0 0.0
      %3064 = vmatpush1.msra.mxu0 %v2852
      %3065 = vmatprep.subr.mxu0 0.0
      %3066 = vmatpush1.msra.mxu0 %v2853
      %3067 = vmatprep.subr.mxu0 0.0
      %3068 = vmatpush1.msra.mxu0 %v2854
      %3069 = vmatprep.subr.mxu0 0.0
      %3070 = vmatpush1.msra.mxu0 %v2855
      %3071 = vmatprep.subr.mxu0 0.0
      %3072 = vmatpush1.msra.mxu0 %v2856
      %3073 = vmatprep.subr.mxu0 0.0
      %3074 = vmatpush1.msra.mxu0 %v2857
      %3075 = vmatprep.subr.mxu0 0.0
      %3076 = vmatpush1.msra.mxu0 %v2858
      %3077 = vmatprep.subr.mxu0 0.0
      %3078 = vmatpush1.msra.mxu0 %v2859
      %3079 = vmatprep.subr.mxu0 0.0
      %3080 = vmatpush1.msra.mxu0 %v2860
      %3081 = vmatprep.subr.mxu0 0.0
      %3082 = vmatpush1.msra.mxu0 %v2861
      %3083 = vmatprep.subr.mxu0 0.0
      %3084 = vmatpush1.msra.mxu0 %v2862
      %3085 = vmatprep.mubr.f32.mxu0 %v2559
      %3086 = vmatmul.mubr.f32.gmra.mrb[0].mxu0 %v2558
      %v3087 = vpop.f32.mrb[0].mxu0
      %v3088 = vadd.f32 %v3013, %v3087
      %v3089 = vpop.f32.mrb[0].mxu0
      %3090 = vmatprep.mubr.f32.mxu0 %v2566
      %3091 = vmatmul.mubr.f32.gmra.mrb[0].mxu0 %v2565
      %v3092 = vpop.f32.mrb[0].mxu0
      %v3093 = vadd.f32 %v3018, %v3092
      %v3094 = vpop.f32.mrb[0].mxu0
      %3095 = vdwg.mxu0
      %3096 = vmatprep.subr.mxu0 0.0
      %3097 = vmatpush1.msra.mxu0 %v2863
      %3098 = vmatprep.subr.mxu0 0.0
      %3099 = vmatpush1.msra.mxu0 %v2864
      %3100 = vmatprep.subr.mxu0 0.0
      %3101 = vmatpush1.msra.mxu0 0.0
      %3102 = vmatprep.subr.mxu0 0.0
      %3103 = vmatpush1.msra.mxu0 0.0
      %3104 = vmatprep.subr.mxu0 0.0
      %3105 = vmatpush1.msra.mxu0 0.0
      %3106 = vmatprep.subr.mxu0 0.0
      %3107 = vmatpush1.msra.mxu0 0.0
      %3108 = vmatprep.subr.mxu0 0.0
      %3109 = vmatpush1.msra.mxu0 0.0
      %3110 = vmatprep.subr.mxu0 0.0
      %3111 = vmatpush1.msra.mxu0 0.0
      %3112 = vmatprep.subr.mxu0 0.0
      %3113 = vmatpush1.msra.mxu0 0.0
      %3114 = vmatprep.subr.mxu0 0.0
      %3115 = vmatpush1.msra.mxu0 0.0
      %3116 = vmatprep.subr.mxu0 0.0
      %3117 = vmatpush1.msra.mxu0 0.0
      %3118 = vmatprep.subr.mxu0 0.0
      %3119 = vmatpush1.msra.mxu0 0.0
      %3120 = vmatprep.subr.mxu0 0.0
      %3121 = vmatpush1.msra.mxu0 0.0
      %3122 = vmatprep.subr.mxu0 0.0
      %3123 = vmatpush1.msra.mxu0 0.0
      %3124 = vmatprep.subr.mxu0 0.0
      %3125 = vmatpush1.msra.mxu0 0.0
      %3126 = vmatprep.subr.mxu0 0.0
      %3127 = vmatpush1.msra.mxu0 0.0
      %3128 = vmatprep.subr.mxu0 0.0
      %3129 = vmatpush1.msra.mxu0 0.0
      %3130 = vmatprep.subr.mxu0 0.0
      %3131 = vmatpush1.msra.mxu0 0.0
      %3132 = vmatprep.subr.mxu0 0.0
      %3133 = vmatpush1.msra.mxu0 0.0
      %3134 = vmatprep.subr.mxu0 0.0
      %3135 = vmatpush1.msra.mxu0 0.0
      %3136 = vmatprep.subr.mxu0 0.0
      %3137 = vmatpush1.msra.mxu0 0.0
      %3138 = vmatprep.subr.mxu0 0.0
      %3139 = vmatpush1.msra.mxu0 0.0
      %3140 = vmatprep.subr.mxu0 0.0
      %3141 = vmatpush1.msra.mxu0 0.0
      %3142 = vmatprep.subr.mxu0 0.0
      %3143 = vmatpush1.msra.mxu0 0.0
      %3144 = vmatprep.subr.mxu0 0.0
      %3145 = vmatpush1.msra.mxu0 0.0
      %3146 = vmatprep.subr.mxu0 0.0
      %3147 = vmatpush1.msra.mxu0 0.0
      %3148 = vmatprep.subr.mxu0 0.0
      %3149 = vmatpush1.msra.mxu0 0.0
      %3150 = vmatprep.subr.mxu0 0.0
      %3151 = vmatpush1.msra.mxu0 0.0
      %3152 = vmatprep.subr.mxu0 0.0
      %3153 = vmatpush1.msra.mxu0 0.0
      %3154 = vmatprep.subr.mxu0 0.0
      %3155 = vmatpush1.msra.mxu0 0.0
      %3156 = vmatprep.subr.mxu0 0.0
      %3157 = vmatpush1.msra.mxu0 0.0
      %3158 = vmatprep.subr.mxu0 0.0
      %3159 = vmatpush1.msra.mxu0 0.0
      %3160 = vmatprep.mubr.f32.mxu0 0.0
      %3161 = vmatmul.mubr.f32.gmra.mrb[0].mxu0 %v2866
      %v3162 = vpop.f32.mrb[0].mxu0
      %v3163 = vadd.f32 %v3088, %v3162
      %v3164 = vpop.f32.mrb[0].mxu0
      %3165 = vmatprep.mubr.f32.mxu0 0.0
      %3166 = vmatmul.mubr.f32.gmra.mrb[0].mxu0 %v2869
      %v3167 = vpop.f32.mrb[0].mxu0
      %v3168 = vadd.f32 %v3093, %v3167
      %v3169 = vpop.f32.mrb[0].mxu0
      %3170 = vdwg.mxu0
      %v3171 = vmul.f32 %v349, %v3163
      %v3172 = vmul.f32 %v354, %v3168
      %3173 = vst.msk [vmem:[%s251] sm:$0xff] %vm1501, %v3171
      %3174 = vst.msk [vmem:[%s251 + $0x8] sm:$0xff] %vm1501, %v3172
      %p3175 = scmp.lt.s32.totalorder %s17, 1
      %s3176 = scalar_select %p3175, %s17, 1
      %s3177 = smul.addr %s3176, 2
      %s3178 = smul.addr %s3177, 8
      %s3179 = scalar_lea.vmem %s6, %s3178
      // Predicated region
      $region45: #{primary_capsule_forward.1} parent=43 // pred_check
        %p3180 = pneg %p166
      $region46: #{primary_capsule_forward.1} parent=43 // pred_check_branch
        %3182 = sbr.rel (%p3180) target = $region48
      $region47: #{primary_capsule_forward.1} parent=43 // pred_region
        _
      $region48: #{primary_capsule_forward.1} parent=43 // pred_fallthru
        _
    $region44: #{primary_capsule_forward.1} parent=5 // pred_fallthru
      _
    %p3183 = scmp.le.s32.totalorder 2, %s12
    // Predicated region
    $region49: #{primary_capsule_forward.1} parent=5 // pred_check
      %p3184 = pneg %p3183
    $region50: #{primary_capsule_forward.1} parent=5 // pred_check_branch
      %3186 = sbr.rel (%p3184) target = $region52
    $region51: #{primary_capsule_forward.1} parent=5 // pred_region
      %s3187 = ssub.s32 %s12, 2
      // Predicated region
      $region53: #{primary_capsule_forward.1} parent=51 // pred_check
        %p3188 = pneg %p172
      $region54: #{primary_capsule_forward.1} parent=51 // pred_check_branch
        %3190 = sbr.rel (%p3188) target = $region56
      $region55: #{primary_capsule_forward.1} parent=51 // pred_region
        %p3191 = scmp.lt.s32.totalorder %s18, 1
        %s3192 = scalar_select %p3191, %s18, 1
        %s3193 = smul.addr %s3192, 2
        %s3194 = smul.addr %s3193, 8
        %s3195 = scalar_lea.vmem %s6, %s3194
      $region56: #{primary_capsule_forward.1} parent=51 // pred_fallthru
        _
    $region52: #{primary_capsule_forward.1} parent=5 // pred_fallthru
      _
  $region6: #{primary_capsule_forward.1} parent=0 // loop_footer
    %s16 = sadd.s32 1, %s12
  $region7: #{primary_capsule_forward.1} parent=0 // loop_footer_branch
    %11 = sbr.rel target = $region3
  $region8: #{primary_capsule_forward.1} parent=0 // loop_exit
    _

</llo_original>
